<compile_context>
chip_gen: v7x
topology: tpu7x:2x2x1
jax: 0.10.0
libtpu: 0.0.40
codegen_flags: <defaults>
</compile_context>

<pallas_src>
import functools
import math

import jax
import jax.numpy as jnp
from jax import lax
from jax.experimental import pallas as pl
from jax.experimental.pallas import tpu as pltpu


def _layer_norm(x, gamma, beta, eps):
    mu = jnp.mean(x, axis=-1, keepdims=True)
    xc = x - mu
    var = jnp.mean(xc * xc, axis=-1, keepdims=True)
    return xc * lax.rsqrt(var + eps) * gamma + beta


def _make_kernel(nhead, scale, ln_eps, has_pos):
    def kernel(*refs):
        if has_pos:
            (src_ref, pos_ref, w_in_ref, b_in_ref, wo_ref,
             w1_ref, b1_ref, w2_ref, vecs_ref, out_ref) = refs
        else:
            (src_ref, w_in_ref, b_in_ref, wo_ref,
             w1_ref, b1_ref, w2_ref, vecs_ref, out_ref) = refs
            pos_ref = None

        f32 = jnp.float32
        bf16 = jnp.bfloat16

        src = src_ref[0].astype(f32)                               # (S, D)
        qk = src if pos_ref is None else src + pos_ref[0].astype(f32)
        S, D = src.shape
        dh = D // nhead

        src_b = src.astype(bf16)
        qk_b = qk.astype(bf16)

        # Packed QKV projection; slice the weight/bias refs directly (static views).
        q = jnp.dot(qk_b, w_in_ref[:, 0:D],
                    preferred_element_type=f32) + b_in_ref[:, 0:D]
        k = jnp.dot(qk_b, w_in_ref[:, D:2 * D],
                    preferred_element_type=f32) + b_in_ref[:, D:2 * D]
        v = jnp.dot(src_b, w_in_ref[:, 2 * D:3 * D],
                    preferred_element_type=f32) + b_in_ref[:, 2 * D:3 * D]

        vecs = vecs_ref[...]                                       # (6, D) f32
        bo, g1, beta1 = vecs[0:1, :], vecs[1:2, :], vecs[2:3, :]
        b2, g2, beta2 = vecs[3:4, :], vecs[4:5, :], vecs[5:6, :]

        # Per-head scaled dot-product attention, accumulated straight into the
        # out-projection (no ctx scratch, no narrow-lane stores).
        attn = jnp.zeros((S, D), f32)
        for h in range(nhead):
            lo, hi = h * dh, (h + 1) * dh
            qh = q[:, lo:hi].astype(bf16)
            kh = k[:, lo:hi].astype(bf16)
            vh = v[:, lo:hi].astype(bf16)
            # q @ k^T without an explicit transpose: contract the last axes.
            s = lax.dot_general(qh, kh, (((1,), (1,)), ((), ())),
                                preferred_element_type=f32) * scale      # (S, S)
            s = s - jnp.max(s, axis=-1, keepdims=True)
            p = jnp.exp(s)
            p = p * pl.reciprocal(jnp.sum(p, axis=-1, keepdims=True), approx=True)
            ctx_h = jnp.dot(p.astype(bf16), vh, preferred_element_type=f32)  # (S, dh)
            attn = attn + jnp.dot(ctx_h.astype(bf16), wo_ref[lo:hi, :],
                                  preferred_element_type=f32)
        attn = attn + bo

        # Residual + LayerNorm1 (dropout1 == identity in eval mode).
        x = _layer_norm(src + attn, g1, beta1, ln_eps)

        # Feed-forward: Linear1 -> ReLU -> Linear2 (dropout == identity in eval mode).
        h1 = jnp.dot(x.astype(bf16), w1_ref[...], preferred_element_type=f32) + b1_ref[...]
        h1 = jnp.maximum(h1, 0.0)
        ff = jnp.dot(h1.astype(bf16), w2_ref[...], preferred_element_type=f32) + b2

        # Residual + LayerNorm2 (dropout2 == identity in eval mode).
        y = _layer_norm(x + ff, g2, beta2, ln_eps)
        out_ref[0] = y.astype(out_ref.dtype)

    return kernel


def transformer_encoder_layer(src, params, *, nhead, pos=None, ln_eps=1e-5):
    """Fused TransformerEncoderLayer.forward (eval mode) on TPU via Pallas.

    src: (B, S, D) float32.
    params: dict with pre-transposed matmul weights in bf16 (w_in (D,3D), wo (D,D),
            w1 (D,F), w2 (F,D)), f32 biases b_in (1,3D), b1 (1,F), and a packed f32
            (6, D) array `vecs` = [out_proj_b, gamma1, beta1, linear2_b, gamma2, beta2].
    """
    B, S, D = src.shape
    assert D % nhead == 0
    F = params["w1"].shape[1]
    scale = 1.0 / math.sqrt(D // nhead)
    has_pos = pos is not None

    kernel = _make_kernel(int(nhead), float(scale), float(ln_eps), has_pos)

    batch3 = lambda b: (b, 0, 0)
    zero2 = lambda b: (0, 0)

    in_specs = [pl.BlockSpec((1, S, D), batch3)]          # src
    inputs = [src]
    if has_pos:
        pos_b = jnp.broadcast_to(jnp.asarray(pos, src.dtype).reshape((-1, S, D)), (B, S, D))
        in_specs.append(pl.BlockSpec((1, S, D), batch3))  # pos (added in-kernel)
        inputs.append(pos_b)
    in_specs += [
        pl.BlockSpec((D, 3 * D), zero2),   # w_in  (packed QKV, transposed, bf16)
        pl.BlockSpec((1, 3 * D), zero2),   # b_in  (f32)
        pl.BlockSpec((D, D), zero2),       # wo    (out_proj, transposed, bf16)
        pl.BlockSpec((D, F), zero2),       # w1    (linear1, transposed, bf16)
        pl.BlockSpec((1, F), zero2),       # b1    (f32)
        pl.BlockSpec((F, D), zero2),       # w2    (linear2, transposed, bf16)
        pl.BlockSpec((6, D), zero2),       # packed [bo, g1, beta1, b2, g2, beta2] (f32)
    ]
    inputs += [params["w_in"], params["b_in"], params["wo"],
               params["w1"], params["b1"], params["w2"], params["vecs"]]

    # Explicit VMEM budget: bf16 weights + f32 per-step activations, with headroom,
    # capped at 64 MiB so the same config is valid on v7x.
    weight_bytes = 2 * (3 * D * D + D * D + 2 * D * F)
    act_bytes = 4 * (12 * S * D + 2 * S * S + 2 * S * F + 4 * D + F)
    vmem_limit = int(min(max(4 * (weight_bytes + act_bytes), 16 << 20), 64 << 20))

    grid_spec = pltpu.PrefetchScalarGridSpec(
        num_scalar_prefetch=0,
        grid=(B,),
        in_specs=in_specs,
        out_specs=pl.BlockSpec((1, S, D), batch3),
    )

    return pl.pallas_call(
        kernel,
        out_shape=jax.ShapeDtypeStruct((B, S, D), src.dtype),
        grid_spec=grid_spec,
        compiler_params=pltpu.CompilerParams(
            dimension_semantics=("parallel",),   # batch axis shardable across TCs (v7x)
            vmem_limit_bytes=vmem_limit,
        ),
    )(*inputs)


def _ref_layer(src, p, nhead, pos=None, eps=1e-5):
    """Pure-JAX f32 reference mirroring the PyTorch forward (eval mode)."""
    B, S, D = src.shape
    dh = D // nhead
    qk = src if pos is None else src + pos
    q = qk @ p["w_in"][:, :D] + p["b_in"][:, :D]
    k = qk @ p["w_in"][:, D:2 * D] + p["b_in"][:, D:2 * D]
    v = src @ p["w_in"][:, 2 * D:] + p["b_in"][:, 2 * D:]
    qh = q.reshape(B, S, nhead, dh).transpose(0, 2, 1, 3)
    kh = k.reshape(B, S, nhead, dh).transpose(0, 2, 1, 3)
    vh = v.reshape(B, S, nhead, dh).transpose(0, 2, 1, 3)
    s = jnp.einsum("bhqd,bhkd->bhqk", qh, kh) / math.sqrt(dh)
    a = jax.nn.softmax(s, axis=-1)
    ctx = jnp.einsum("bhqk,bhkd->bhqd", a, vh).transpose(0, 2, 1, 3).reshape(B, S, D)
    attn = ctx @ p["wo"] + p["bo"]

    def ln(x, g, b):
        mu = x.mean(-1, keepdims=True)
        xc = x - mu
        var = (xc * xc).mean(-1, keepdims=True)
        return xc / jnp.sqrt(var + eps) * g + b

    x = ln(src + attn, p["g1"], p["beta1"])
    h = jnp.maximum(x @ p["w1"] + p["b1"], 0.0)
    return ln(x + h @ p["w2"] + p["b2"], p["g2"], p["beta2"])


if __name__ == "__main__":
    B, S, D, H, F = 2, 8, 32, 4, 64   # batch, seq, d_model, nhead, dim_feedforward

    key = jax.random.PRNGKey(0)
    ks = jax.random.split(key, 13)

    def init(k, shape, s=0.1):
        return s * jax.random.normal(k, shape, dtype=jnp.float32)

    def bf16_round(x):
        # bf16-representable f32 values so the kernel's bf16 MXU path and the f32
        # reference share identical weight values.
        return x.astype(jnp.bfloat16).astype(jnp.float32)

    # PyTorch-layout parameters (Linear: y = x @ W^T + b).
    in_proj_w = bf16_round(init(ks[0], (3 * D, D)))
    in_proj_b = init(ks[1], (3 * D,))
    out_proj_w = bf16_round(init(ks[2], (D, D)))
    out_proj_b = init(ks[3], (D,))
    l1_w = bf16_round(init(ks[4], (F, D)))
    l1_b = init(ks[5], (F,))
    l2_w = bf16_round(init(ks[6], (D, F)))
    l2_b = init(ks[7], (D,))
    g1 = 1.0 + init(ks[8], (D,))
    beta1 = init(ks[9], (D,))
    g2 = 1.0 + init(ks[10], (D,))
    beta2 = init(ks[11], (D,))

    # Kernel params: pre-transposed matmul weights in bf16, tiny vectors packed.
    params = dict(
        w_in=in_proj_w.T.astype(jnp.bfloat16),
        b_in=in_proj_b.reshape(1, 3 * D),
        wo=out_proj_w.T.astype(jnp.bfloat16),
        w1=l1_w.T.astype(jnp.bfloat16),
        b1=l1_b.reshape(1, F),
        w2=l2_w.T.astype(jnp.bfloat16),
        vecs=jnp.stack([out_proj_b, g1, beta1, l2_b, g2, beta2], axis=0),  # (6, D)
    )

    # f32 reference params (PyTorch semantics).
    ref_params = dict(
        w_in=in_proj_w.T, b_in=in_proj_b.reshape(1, 3 * D),
        wo=out_proj_w.T, bo=out_proj_b.reshape(1, D),
        w1=l1_w.T, b1=l1_b.reshape(1, F),
        w2=l2_w.T, b2=l2_b.reshape(1, D),
        g1=g1.reshape(1, D), beta1=beta1.reshape(1, D),
        g2=g2.reshape(1, D), beta2=beta2.reshape(1, D),
    )

    src = bf16_round(jax.random.normal(ks[12], (B, S, D), dtype=jnp.float32))

    out = transformer_encoder_layer(src, params, nhead=H)
    out = jax.block_until_ready(out)

    ref = _ref_layer(src, ref_params, nhead=H)
    err = float(jnp.max(jnp.abs(out - ref)))
    assert out.shape == (B, S, D)
    # bf16 MXU operands (f32 accumulation) -> tolerance looser than the pure-f32 path.
    assert jnp.allclose(out, ref, atol=3e-2, rtol=3e-2), f"max abs err = {err}"
    print("KERNEL_OK")
</pallas_src>

<mosaic_0001>
module attributes {stable_mosaic.version = 11 : i64} {
  func.func @kernel(%arg0: i32, %arg1: memref<1x8x32xf32, #tpu.memory_space<vmem>>, %arg2: memref<32x96xbf16, #tpu.memory_space<vmem>>, %arg3: memref<1x96xf32, #tpu.memory_space<vmem>>, %arg4: memref<32x32xbf16, #tpu.memory_space<vmem>>, %arg5: memref<32x64xbf16, #tpu.memory_space<vmem>>, %arg6: memref<1x64xf32, #tpu.memory_space<vmem>>, %arg7: memref<64x32xbf16, #tpu.memory_space<vmem>>, %arg8: memref<6x32xf32, #tpu.memory_space<vmem>>, %arg9: memref<1x8x32xf32, #tpu.memory_space<vmem>>) attributes {dimension_semantics = [#tpu.dimension_semantics<parallel>], iteration_bounds = array<i64: 2>, scalar_prefetch = 0 : i64, scratch_operands = 0 : i64, tpu.core_type = #tpu.core_type<tc>, window_params = [{transform_indices = @transform_0, window_bounds = array<i64: 1, 8, 32>}, {pipeline_mode = #tpu.pipeline_mode<synchronous>, transform_indices = @transform_1, window_bounds = array<i64: 32, 96>}, {pipeline_mode = #tpu.pipeline_mode<synchronous>, transform_indices = @transform_2, window_bounds = array<i64: 1, 96>}, {pipeline_mode = #tpu.pipeline_mode<synchronous>, transform_indices = @transform_3, window_bounds = array<i64: 32, 32>}, {pipeline_mode = #tpu.pipeline_mode<synchronous>, transform_indices = @transform_4, window_bounds = array<i64: 32, 64>}, {pipeline_mode = #tpu.pipeline_mode<synchronous>, transform_indices = @transform_5, window_bounds = array<i64: 1, 64>}, {pipeline_mode = #tpu.pipeline_mode<synchronous>, transform_indices = @transform_6, window_bounds = array<i64: 64, 32>}, {pipeline_mode = #tpu.pipeline_mode<synchronous>, transform_indices = @transform_7, window_bounds = array<i64: 6, 32>}, {transform_indices = @transform_8, window_bounds = array<i64: 1, 8, 32>}]} {
    %c0 = arith.constant 0 : index
    %c0_0 = arith.constant 0 : index
    %c0_1 = arith.constant 0 : index
    %0 = vector.load %arg1[%c0, %c0_0, %c0_1] : memref<1x8x32xf32, #tpu.memory_space<vmem>>, vector<1x8x32xf32>
    %1 = vector.shape_cast %0 : vector<1x8x32xf32> to vector<8x32xf32>
    %2 = arith.truncf %1 : vector<8x32xf32> to vector<8x32xbf16>
    %3 = arith.truncf %1 : vector<8x32xf32> to vector<8x32xbf16>
    %c0_2 = arith.constant 0 : index
    %c0_3 = arith.constant 0 : index
    %4 = vector.load %arg2[%c0_2, %c0_3] : memref<32x96xbf16, #tpu.memory_space<vmem>>, vector<32x32xbf16>
    %cst = arith.constant dense<0.000000e+00> : vector<8x32xf32>
    %5 = tpu.matmul %3, %4, %cst {dimension_numbers = #tpu.dot_dimension_numbers<[1], [0], [0], [1], [0, 0, 1, 1], [], []>} : vector<8x32xbf16>, vector<32x32xbf16>, vector<8x32xf32> -> vector<8x32xf32>
    %c0_4 = arith.constant 0 : index
    %c0_5 = arith.constant 0 : index
    %6 = vector.load %arg3[%c0_4, %c0_5] : memref<1x96xf32, #tpu.memory_space<vmem>>, vector<1x32xf32>
    %7 = vector.broadcast %6 : vector<1x32xf32> to vector<8x32xf32>
    %8 = arith.addf %5, %7 : vector<8x32xf32>
    %c0_6 = arith.constant 0 : index
    %c32 = arith.constant 32 : index
    %9 = vector.load %arg2[%c0_6, %c32] : memref<32x96xbf16, #tpu.memory_space<vmem>>, vector<32x32xbf16>
    %cst_7 = arith.constant dense<0.000000e+00> : vector<8x32xf32>
    %10 = tpu.matmul %3, %9, %cst_7 {dimension_numbers = #tpu.dot_dimension_numbers<[1], [0], [0], [1], [0, 0, 1, 1], [], []>} : vector<8x32xbf16>, vector<32x32xbf16>, vector<8x32xf32> -> vector<8x32xf32>
    %c0_8 = arith.constant 0 : index
    %c32_9 = arith.constant 32 : index
    %11 = vector.load %arg3[%c0_8, %c32_9] : memref<1x96xf32, #tpu.memory_space<vmem>>, vector<1x32xf32>
    %12 = vector.broadcast %11 : vector<1x32xf32> to vector<8x32xf32>
    %13 = arith.addf %10, %12 : vector<8x32xf32>
    %c0_10 = arith.constant 0 : index
    %c64 = arith.constant 64 : index
    %14 = vector.load %arg2[%c0_10, %c64] : memref<32x96xbf16, #tpu.memory_space<vmem>>, vector<32x32xbf16>
    %cst_11 = arith.constant dense<0.000000e+00> : vector<8x32xf32>
    %15 = tpu.matmul %2, %14, %cst_11 {dimension_numbers = #tpu.dot_dimension_numbers<[1], [0], [0], [1], [0, 0, 1, 1], [], []>} : vector<8x32xbf16>, vector<32x32xbf16>, vector<8x32xf32> -> vector<8x32xf32>
    %c0_12 = arith.constant 0 : index
    %c64_13 = arith.constant 64 : index
    %16 = vector.load %arg3[%c0_12, %c64_13] : memref<1x96xf32, #tpu.memory_space<vmem>>, vector<1x32xf32>
    %17 = vector.broadcast %16 : vector<1x32xf32> to vector<8x32xf32>
    %18 = arith.addf %15, %17 : vector<8x32xf32>
    %c0_14 = arith.constant 0 : index
    %c0_15 = arith.constant 0 : index
    %19 = vector.load %arg8[%c0_14, %c0_15] : memref<6x32xf32, #tpu.memory_space<vmem>>, vector<6x32xf32>
    %20 = vector.extract_strided_slice %19 {offsets = [0, 0], sizes = [1, 32], strides = [1, 1]} : vector<6x32xf32> to vector<1x32xf32>
    %21 = vector.extract_strided_slice %19 {offsets = [1, 0], sizes = [1, 32], strides = [1, 1]} : vector<6x32xf32> to vector<1x32xf32>
    %22 = vector.extract_strided_slice %19 {offsets = [2, 0], sizes = [1, 32], strides = [1, 1]} : vector<6x32xf32> to vector<1x32xf32>
    %23 = vector.extract_strided_slice %19 {offsets = [3, 0], sizes = [1, 32], strides = [1, 1]} : vector<6x32xf32> to vector<1x32xf32>
    %24 = vector.extract_strided_slice %19 {offsets = [4, 0], sizes = [1, 32], strides = [1, 1]} : vector<6x32xf32> to vector<1x32xf32>
    %25 = vector.extract_strided_slice %19 {offsets = [5, 0], sizes = [1, 32], strides = [1, 1]} : vector<6x32xf32> to vector<1x32xf32>
    %cst_16 = arith.constant 0.000000e+00 : f32
    %26 = vector.broadcast %cst_16 : f32 to vector<8x32xf32>
    %27 = vector.extract_strided_slice %8 {offsets = [0, 0], sizes = [8, 8], strides = [1, 1]} : vector<8x32xf32> to vector<8x8xf32>
    %28 = arith.truncf %27 : vector<8x8xf32> to vector<8x8xbf16>
    %29 = vector.extract_strided_slice %13 {offsets = [0, 0], sizes = [8, 8], strides = [1, 1]} : vector<8x32xf32> to vector<8x8xf32>
    %30 = arith.truncf %29 : vector<8x8xf32> to vector<8x8xbf16>
    %31 = vector.extract_strided_slice %18 {offsets = [0, 0], sizes = [8, 8], strides = [1, 1]} : vector<8x32xf32> to vector<8x8xf32>
    %32 = arith.truncf %31 : vector<8x8xf32> to vector<8x8xbf16>
    %cst_17 = arith.constant dense<0.000000e+00> : vector<8x8xf32>
    %33 = tpu.matmul %28, %30, %cst_17 {dimension_numbers = #tpu.dot_dimension_numbers<[1], [1], [0], [0], [0, 0, 1, 0], [], []>} : vector<8x8xbf16>, vector<8x8xbf16>, vector<8x8xf32> -> vector<8x8xf32>
    %cst_18 = arith.constant 0.353553385 : f32
    %34 = vector.broadcast %cst_18 : f32 to vector<8x8xf32>
    %35 = arith.mulf %33, %34 : vector<8x8xf32>
    %cst_19 = arith.constant dense<0xFF800000> : vector<8xf32>
    %36 = vector.multi_reduction <maximumf>, %35, %cst_19 [1] : vector<8x8xf32> to vector<8xf32>
    %37 = vector.shape_cast %36 : vector<8xf32> to vector<8x1xf32>
    %38 = vector.broadcast %37 : vector<8x1xf32> to vector<8x8xf32>
    %39 = arith.subf %35, %38 : vector<8x8xf32>
    %40 = math.exp %39 : vector<8x8xf32>
    %cst_20 = arith.constant dense<0.000000e+00> : vector<8xf32>
    %41 = vector.multi_reduction <add>, %40, %cst_20 [1] : vector<8x8xf32> to vector<8xf32>
    %42 = vector.shape_cast %41 : vector<8xf32> to vector<8x1xf32>
    %43 = tpu.reciprocal %42 {approx = true} : vector<8x1xf32> -> vector<8x1xf32>
    %44 = vector.broadcast %43 : vector<8x1xf32> to vector<8x8xf32>
    %45 = arith.mulf %40, %44 : vector<8x8xf32>
    %46 = arith.truncf %45 : vector<8x8xf32> to vector<8x8xbf16>
    %cst_21 = arith.constant dense<0.000000e+00> : vector<8x8xf32>
    %47 = tpu.matmul %46, %32, %cst_21 {dimension_numbers = #tpu.dot_dimension_numbers<[1], [0], [0], [1], [0, 0, 1, 1], [], []>} : vector<8x8xbf16>, vector<8x8xbf16>, vector<8x8xf32> -> vector<8x8xf32>
    %48 = arith.truncf %47 : vector<8x8xf32> to vector<8x8xbf16>
    %c0_22 = arith.constant 0 : index
    %c0_23 = arith.constant 0 : index
    %49 = vector.load %arg4[%c0_22, %c0_23] : memref<32x32xbf16, #tpu.memory_space<vmem>>, vector<8x32xbf16>
    %cst_24 = arith.constant dense<0.000000e+00> : vector<8x32xf32>
    %50 = tpu.matmul %48, %49, %cst_24 {dimension_numbers = #tpu.dot_dimension_numbers<[1], [0], [0], [1], [0, 0, 1, 1], [], []>} : vector<8x8xbf16>, vector<8x32xbf16>, vector<8x32xf32> -> vector<8x32xf32>
    %51 = arith.addf %26, %50 : vector<8x32xf32>
    %52 = vector.extract_strided_slice %8 {offsets = [0, 8], sizes = [8, 8], strides = [1, 1]} : vector<8x32xf32> to vector<8x8xf32>
    %53 = arith.truncf %52 : vector<8x8xf32> to vector<8x8xbf16>
    %54 = vector.extract_strided_slice %13 {offsets = [0, 8], sizes = [8, 8], strides = [1, 1]} : vector<8x32xf32> to vector<8x8xf32>
    %55 = arith.truncf %54 : vector<8x8xf32> to vector<8x8xbf16>
    %56 = vector.extract_strided_slice %18 {offsets = [0, 8], sizes = [8, 8], strides = [1, 1]} : vector<8x32xf32> to vector<8x8xf32>
    %57 = arith.truncf %56 : vector<8x8xf32> to vector<8x8xbf16>
    %cst_25 = arith.constant dense<0.000000e+00> : vector<8x8xf32>
    %58 = tpu.matmul %53, %55, %cst_25 {dimension_numbers = #tpu.dot_dimension_numbers<[1], [1], [0], [0], [0, 0, 1, 0], [], []>} : vector<8x8xbf16>, vector<8x8xbf16>, vector<8x8xf32> -> vector<8x8xf32>
    %cst_26 = arith.constant 0.353553385 : f32
    %59 = vector.broadcast %cst_26 : f32 to vector<8x8xf32>
    %60 = arith.mulf %58, %59 : vector<8x8xf32>
    %cst_27 = arith.constant dense<0xFF800000> : vector<8xf32>
    %61 = vector.multi_reduction <maximumf>, %60, %cst_27 [1] : vector<8x8xf32> to vector<8xf32>
    %62 = vector.shape_cast %61 : vector<8xf32> to vector<8x1xf32>
    %63 = vector.broadcast %62 : vector<8x1xf32> to vector<8x8xf32>
    %64 = arith.subf %60, %63 : vector<8x8xf32>
    %65 = math.exp %64 : vector<8x8xf32>
    %cst_28 = arith.constant dense<0.000000e+00> : vector<8xf32>
    %66 = vector.multi_reduction <add>, %65, %cst_28 [1] : vector<8x8xf32> to vector<8xf32>
    %67 = vector.shape_cast %66 : vector<8xf32> to vector<8x1xf32>
    %68 = tpu.reciprocal %67 {approx = true} : vector<8x1xf32> -> vector<8x1xf32>
    %69 = vector.broadcast %68 : vector<8x1xf32> to vector<8x8xf32>
    %70 = arith.mulf %65, %69 : vector<8x8xf32>
    %71 = arith.truncf %70 : vector<8x8xf32> to vector<8x8xbf16>
    %cst_29 = arith.constant dense<0.000000e+00> : vector<8x8xf32>
    %72 = tpu.matmul %71, %57, %cst_29 {dimension_numbers = #tpu.dot_dimension_numbers<[1], [0], [0], [1], [0, 0, 1, 1], [], []>} : vector<8x8xbf16>, vector<8x8xbf16>, vector<8x8xf32> -> vector<8x8xf32>
    %73 = arith.truncf %72 : vector<8x8xf32> to vector<8x8xbf16>
    %c8 = arith.constant 8 : index
    %c0_30 = arith.constant 0 : index
    %74 = vector.load %arg4[%c8, %c0_30] : memref<32x32xbf16, #tpu.memory_space<vmem>>, vector<8x32xbf16>
    %cst_31 = arith.constant dense<0.000000e+00> : vector<8x32xf32>
    %75 = tpu.matmul %73, %74, %cst_31 {dimension_numbers = #tpu.dot_dimension_numbers<[1], [0], [0], [1], [0, 0, 1, 1], [], []>} : vector<8x8xbf16>, vector<8x32xbf16>, vector<8x32xf32> -> vector<8x32xf32>
    %76 = arith.addf %51, %75 : vector<8x32xf32>
    %77 = vector.extract_strided_slice %8 {offsets = [0, 16], sizes = [8, 8], strides = [1, 1]} : vector<8x32xf32> to vector<8x8xf32>
    %78 = arith.truncf %77 : vector<8x8xf32> to vector<8x8xbf16>
    %79 = vector.extract_strided_slice %13 {offsets = [0, 16], sizes = [8, 8], strides = [1, 1]} : vector<8x32xf32> to vector<8x8xf32>
    %80 = arith.truncf %79 : vector<8x8xf32> to vector<8x8xbf16>
    %81 = vector.extract_strided_slice %18 {offsets = [0, 16], sizes = [8, 8], strides = [1, 1]} : vector<8x32xf32> to vector<8x8xf32>
    %82 = arith.truncf %81 : vector<8x8xf32> to vector<8x8xbf16>
    %cst_32 = arith.constant dense<0.000000e+00> : vector<8x8xf32>
    %83 = tpu.matmul %78, %80, %cst_32 {dimension_numbers = #tpu.dot_dimension_numbers<[1], [1], [0], [0], [0, 0, 1, 0], [], []>} : vector<8x8xbf16>, vector<8x8xbf16>, vector<8x8xf32> -> vector<8x8xf32>
    %cst_33 = arith.constant 0.353553385 : f32
    %84 = vector.broadcast %cst_33 : f32 to vector<8x8xf32>
    %85 = arith.mulf %83, %84 : vector<8x8xf32>
    %cst_34 = arith.constant dense<0xFF800000> : vector<8xf32>
    %86 = vector.multi_reduction <maximumf>, %85, %cst_34 [1] : vector<8x8xf32> to vector<8xf32>
    %87 = vector.shape_cast %86 : vector<8xf32> to vector<8x1xf32>
    %88 = vector.broadcast %87 : vector<8x1xf32> to vector<8x8xf32>
    %89 = arith.subf %85, %88 : vector<8x8xf32>
    %90 = math.exp %89 : vector<8x8xf32>
    %cst_35 = arith.constant dense<0.000000e+00> : vector<8xf32>
    %91 = vector.multi_reduction <add>, %90, %cst_35 [1] : vector<8x8xf32> to vector<8xf32>
    %92 = vector.shape_cast %91 : vector<8xf32> to vector<8x1xf32>
    %93 = tpu.reciprocal %92 {approx = true} : vector<8x1xf32> -> vector<8x1xf32>
    %94 = vector.broadcast %93 : vector<8x1xf32> to vector<8x8xf32>
    %95 = arith.mulf %90, %94 : vector<8x8xf32>
    %96 = arith.truncf %95 : vector<8x8xf32> to vector<8x8xbf16>
    %cst_36 = arith.constant dense<0.000000e+00> : vector<8x8xf32>
    %97 = tpu.matmul %96, %82, %cst_36 {dimension_numbers = #tpu.dot_dimension_numbers<[1], [0], [0], [1], [0, 0, 1, 1], [], []>} : vector<8x8xbf16>, vector<8x8xbf16>, vector<8x8xf32> -> vector<8x8xf32>
    %98 = arith.truncf %97 : vector<8x8xf32> to vector<8x8xbf16>
    %c16 = arith.constant 16 : index
    %c0_37 = arith.constant 0 : index
    %99 = vector.load %arg4[%c16, %c0_37] : memref<32x32xbf16, #tpu.memory_space<vmem>>, vector<8x32xbf16>
    %cst_38 = arith.constant dense<0.000000e+00> : vector<8x32xf32>
    %100 = tpu.matmul %98, %99, %cst_38 {dimension_numbers = #tpu.dot_dimension_numbers<[1], [0], [0], [1], [0, 0, 1, 1], [], []>} : vector<8x8xbf16>, vector<8x32xbf16>, vector<8x32xf32> -> vector<8x32xf32>
    %101 = arith.addf %76, %100 : vector<8x32xf32>
    %102 = vector.extract_strided_slice %8 {offsets = [0, 24], sizes = [8, 8], strides = [1, 1]} : vector<8x32xf32> to vector<8x8xf32>
    %103 = arith.truncf %102 : vector<8x8xf32> to vector<8x8xbf16>
    %104 = vector.extract_strided_slice %13 {offsets = [0, 24], sizes = [8, 8], strides = [1, 1]} : vector<8x32xf32> to vector<8x8xf32>
    %105 = arith.truncf %104 : vector<8x8xf32> to vector<8x8xbf16>
    %106 = vector.extract_strided_slice %18 {offsets = [0, 24], sizes = [8, 8], strides = [1, 1]} : vector<8x32xf32> to vector<8x8xf32>
    %107 = arith.truncf %106 : vector<8x8xf32> to vector<8x8xbf16>
    %cst_39 = arith.constant dense<0.000000e+00> : vector<8x8xf32>
    %108 = tpu.matmul %103, %105, %cst_39 {dimension_numbers = #tpu.dot_dimension_numbers<[1], [1], [0], [0], [0, 0, 1, 0], [], []>} : vector<8x8xbf16>, vector<8x8xbf16>, vector<8x8xf32> -> vector<8x8xf32>
    %cst_40 = arith.constant 0.353553385 : f32
    %109 = vector.broadcast %cst_40 : f32 to vector<8x8xf32>
    %110 = arith.mulf %108, %109 : vector<8x8xf32>
    %cst_41 = arith.constant dense<0xFF800000> : vector<8xf32>
    %111 = vector.multi_reduction <maximumf>, %110, %cst_41 [1] : vector<8x8xf32> to vector<8xf32>
    %112 = vector.shape_cast %111 : vector<8xf32> to vector<8x1xf32>
    %113 = vector.broadcast %112 : vector<8x1xf32> to vector<8x8xf32>
    %114 = arith.subf %110, %113 : vector<8x8xf32>
    %115 = math.exp %114 : vector<8x8xf32>
    %cst_42 = arith.constant dense<0.000000e+00> : vector<8xf32>
    %116 = vector.multi_reduction <add>, %115, %cst_42 [1] : vector<8x8xf32> to vector<8xf32>
    %117 = vector.shape_cast %116 : vector<8xf32> to vector<8x1xf32>
    %118 = tpu.reciprocal %117 {approx = true} : vector<8x1xf32> -> vector<8x1xf32>
    %119 = vector.broadcast %118 : vector<8x1xf32> to vector<8x8xf32>
    %120 = arith.mulf %115, %119 : vector<8x8xf32>
    %121 = arith.truncf %120 : vector<8x8xf32> to vector<8x8xbf16>
    %cst_43 = arith.constant dense<0.000000e+00> : vector<8x8xf32>
    %122 = tpu.matmul %121, %107, %cst_43 {dimension_numbers = #tpu.dot_dimension_numbers<[1], [0], [0], [1], [0, 0, 1, 1], [], []>} : vector<8x8xbf16>, vector<8x8xbf16>, vector<8x8xf32> -> vector<8x8xf32>
    %123 = arith.truncf %122 : vector<8x8xf32> to vector<8x8xbf16>
    %c24 = arith.constant 24 : index
    %c0_44 = arith.constant 0 : index
    %124 = vector.load %arg4[%c24, %c0_44] : memref<32x32xbf16, #tpu.memory_space<vmem>>, vector<8x32xbf16>
    %cst_45 = arith.constant dense<0.000000e+00> : vector<8x32xf32>
    %125 = tpu.matmul %123, %124, %cst_45 {dimension_numbers = #tpu.dot_dimension_numbers<[1], [0], [0], [1], [0, 0, 1, 1], [], []>} : vector<8x8xbf16>, vector<8x32xbf16>, vector<8x32xf32> -> vector<8x32xf32>
    %126 = arith.addf %101, %125 : vector<8x32xf32>
    %127 = vector.broadcast %20 : vector<1x32xf32> to vector<8x32xf32>
    %128 = arith.addf %126, %127 : vector<8x32xf32>
    %129 = arith.addf %1, %128 : vector<8x32xf32>
    %cst_46 = arith.constant dense<0.000000e+00> : vector<8xf32>
    %130 = vector.multi_reduction <add>, %129, %cst_46 [1] : vector<8x32xf32> to vector<8xf32>
    %131 = vector.shape_cast %130 : vector<8xf32> to vector<8x1xf32>
    %cst_47 = arith.constant 3.200000e+01 : f32
    %132 = vector.broadcast %cst_47 : f32 to vector<8x1xf32>
    %133 = arith.divf %131, %132 : vector<8x1xf32>
    %134 = vector.broadcast %133 : vector<8x1xf32> to vector<8x32xf32>
    %135 = arith.subf %129, %134 : vector<8x32xf32>
    %136 = arith.mulf %135, %135 : vector<8x32xf32>
    %cst_48 = arith.constant dense<0.000000e+00> : vector<8xf32>
    %137 = vector.multi_reduction <add>, %136, %cst_48 [1] : vector<8x32xf32> to vector<8xf32>
    %138 = vector.shape_cast %137 : vector<8xf32> to vector<8x1xf32>
    %cst_49 = arith.constant 3.200000e+01 : f32
    %139 = vector.broadcast %cst_49 : f32 to vector<8x1xf32>
    %140 = arith.divf %138, %139 : vector<8x1xf32>
    %cst_50 = arith.constant 9.99999974E-6 : f32
    %141 = vector.broadcast %cst_50 : f32 to vector<8x1xf32>
    %142 = arith.addf %140, %141 : vector<8x1xf32>
    %143 = math.rsqrt %142 : vector<8x1xf32>
    %144 = vector.broadcast %143 : vector<8x1xf32> to vector<8x32xf32>
    %145 = arith.mulf %135, %144 : vector<8x32xf32>
    %146 = vector.broadcast %21 : vector<1x32xf32> to vector<8x32xf32>
    %147 = arith.mulf %145, %146 : vector<8x32xf32>
    %148 = vector.broadcast %22 : vector<1x32xf32> to vector<8x32xf32>
    %149 = arith.addf %147, %148 : vector<8x32xf32>
    %150 = arith.truncf %149 : vector<8x32xf32> to vector<8x32xbf16>
    %c0_51 = arith.constant 0 : index
    %c0_52 = arith.constant 0 : index
    %151 = vector.load %arg5[%c0_51, %c0_52] : memref<32x64xbf16, #tpu.memory_space<vmem>>, vector<32x64xbf16>
    %cst_53 = arith.constant dense<0.000000e+00> : vector<8x64xf32>
    %152 = tpu.matmul %150, %151, %cst_53 {dimension_numbers = #tpu.dot_dimension_numbers<[1], [0], [0], [1], [0, 0, 1, 1], [], []>} : vector<8x32xbf16>, vector<32x64xbf16>, vector<8x64xf32> -> vector<8x64xf32>
    %c0_54 = arith.constant 0 : index
    %c0_55 = arith.constant 0 : index
    %153 = vector.load %arg6[%c0_54, %c0_55] : memref<1x64xf32, #tpu.memory_space<vmem>>, vector<1x64xf32>
    %154 = vector.broadcast %153 : vector<1x64xf32> to vector<8x64xf32>
    %155 = arith.addf %152, %154 : vector<8x64xf32>
    %cst_56 = arith.constant 0.000000e+00 : f32
    %156 = vector.broadcast %cst_56 : f32 to vector<8x64xf32>
    %157 = arith.maximumf %155, %156 : vector<8x64xf32>
    %158 = arith.truncf %157 : vector<8x64xf32> to vector<8x64xbf16>
    %c0_57 = arith.constant 0 : index
    %c0_58 = arith.constant 0 : index
    %159 = vector.load %arg7[%c0_57, %c0_58] : memref<64x32xbf16, #tpu.memory_space<vmem>>, vector<64x32xbf16>
    %cst_59 = arith.constant dense<0.000000e+00> : vector<8x32xf32>
    %160 = tpu.matmul %158, %159, %cst_59 {dimension_numbers = #tpu.dot_dimension_numbers<[1], [0], [0], [1], [0, 0, 1, 1], [], []>} : vector<8x64xbf16>, vector<64x32xbf16>, vector<8x32xf32> -> vector<8x32xf32>
    %161 = vector.broadcast %23 : vector<1x32xf32> to vector<8x32xf32>
    %162 = arith.addf %160, %161 : vector<8x32xf32>
    %163 = arith.addf %149, %162 : vector<8x32xf32>
    %cst_60 = arith.constant dense<0.000000e+00> : vector<8xf32>
    %164 = vector.multi_reduction <add>, %163, %cst_60 [1] : vector<8x32xf32> to vector<8xf32>
    %165 = vector.shape_cast %164 : vector<8xf32> to vector<8x1xf32>
    %cst_61 = arith.constant 3.200000e+01 : f32
    %166 = vector.broadcast %cst_61 : f32 to vector<8x1xf32>
    %167 = arith.divf %165, %166 : vector<8x1xf32>
    %168 = vector.broadcast %167 : vector<8x1xf32> to vector<8x32xf32>
    %169 = arith.subf %163, %168 : vector<8x32xf32>
    %170 = arith.mulf %169, %169 : vector<8x32xf32>
    %cst_62 = arith.constant dense<0.000000e+00> : vector<8xf32>
    %171 = vector.multi_reduction <add>, %170, %cst_62 [1] : vector<8x32xf32> to vector<8xf32>
    %172 = vector.shape_cast %171 : vector<8xf32> to vector<8x1xf32>
    %cst_63 = arith.constant 3.200000e+01 : f32
    %173 = vector.broadcast %cst_63 : f32 to vector<8x1xf32>
    %174 = arith.divf %172, %173 : vector<8x1xf32>
    %cst_64 = arith.constant 9.99999974E-6 : f32
    %175 = vector.broadcast %cst_64 : f32 to vector<8x1xf32>
    %176 = arith.addf %174, %175 : vector<8x1xf32>
    %177 = math.rsqrt %176 : vector<8x1xf32>
    %178 = vector.broadcast %177 : vector<8x1xf32> to vector<8x32xf32>
    %179 = arith.mulf %169, %178 : vector<8x32xf32>
    %180 = vector.broadcast %24 : vector<1x32xf32> to vector<8x32xf32>
    %181 = arith.mulf %179, %180 : vector<8x32xf32>
    %182 = vector.broadcast %25 : vector<1x32xf32> to vector<8x32xf32>
    %183 = arith.addf %181, %182 : vector<8x32xf32>
    %c0_65 = arith.constant 0 : index
    %c0_66 = arith.constant 0 : index
    %c0_67 = arith.constant 0 : index
    %184 = vector.load %arg9[%c0_65, %c0_66, %c0_67] : memref<1x8x32xf32, #tpu.memory_space<vmem>>, vector<1x8x32xf32>
    %185 = vector.shape_cast %184 : vector<1x8x32xf32> to vector<8x32xf32>
    %186 = vector.shape_cast %183 : vector<8x32xf32> to vector<1x8x32xf32>
    tpu.vector_store %arg9[%c0_65, %c0_66, %c0_67], %186 {strides = array<i32>} : memref<1x8x32xf32, #tpu.memory_space<vmem>>, vector<1x8x32xf32>,
    return
  }
  func.func @transform_0(%arg0: i32) -> (i32, i32, i32) {
    %c0_i32 = arith.constant 0 : i32
    %c0_i32_0 = arith.constant 0 : i32
    %c0_i32_1 = arith.constant 0 : i32
    return %arg0, %c0_i32, %c0_i32_0 : i32, i32, i32
  }
  func.func @transform_1(%arg0: i32) -> (i32, i32) {
    %c0_i32 = arith.constant 0 : i32
    %c0_i32_0 = arith.constant 0 : i32
    %c0_i32_1 = arith.constant 0 : i32
    return %c0_i32, %c0_i32_0 : i32, i32
  }
  func.func @transform_2(%arg0: i32) -> (i32, i32) {
    %c0_i32 = arith.constant 0 : i32
    %c0_i32_0 = arith.constant 0 : i32
    %c0_i32_1 = arith.constant 0 : i32
    return %c0_i32, %c0_i32_0 : i32, i32
  }
  func.func @transform_3(%arg0: i32) -> (i32, i32) {
    %c0_i32 = arith.constant 0 : i32
    %c0_i32_0 = arith.constant 0 : i32
    %c0_i32_1 = arith.constant 0 : i32
    return %c0_i32, %c0_i32_0 : i32, i32
  }
  func.func @transform_4(%arg0: i32) -> (i32, i32) {
    %c0_i32 = arith.constant 0 : i32
    %c0_i32_0 = arith.constant 0 : i32
    %c0_i32_1 = arith.constant 0 : i32
    return %c0_i32, %c0_i32_0 : i32, i32
  }
  func.func @transform_5(%arg0: i32) -> (i32, i32) {
    %c0_i32 = arith.constant 0 : i32
    %c0_i32_0 = arith.constant 0 : i32
    %c0_i32_1 = arith.constant 0 : i32
    return %c0_i32, %c0_i32_0 : i32, i32
  }
  func.func @transform_6(%arg0: i32) -> (i32, i32) {
    %c0_i32 = arith.constant 0 : i32
    %c0_i32_0 = arith.constant 0 : i32
    %c0_i32_1 = arith.constant 0 : i32
    return %c0_i32, %c0_i32_0 : i32, i32
  }
  func.func @transform_7(%arg0: i32) -> (i32, i32) {
    %c0_i32 = arith.constant 0 : i32
    %c0_i32_0 = arith.constant 0 : i32
    %c0_i32_1 = arith.constant 0 : i32
    return %c0_i32, %c0_i32_0 : i32, i32
  }
  func.func @transform_8(%arg0: i32) -> (i32, i32, i32) {
    %c0_i32 = arith.constant 0 : i32
    %c0_i32_0 = arith.constant 0 : i32
    %c0_i32_1 = arith.constant 0 : i32
    return %arg0, %c0_i32, %c0_i32_0 : i32, i32, i32
  }
}

</mosaic_0001>

<llo_original>
// kernel: tpu_custom_call.1
$region0: #{tpu_custom_call.1}
  #allocation0 [shape = 'u32[]', space=smem, size = 0x4, offset = 0x4, fixed_abs, tag = 'smem constant byte address 0x4 - core index']
  #allocation1 [shape = 'u32[144,128]{1,0:T(1,128)}', space=vmem, size = 0x12000, scoped, tag = 'internal scratch']
  %s0 = inlined_call_operand.vmem [shape: f32[2,8,32], index: 0, kind: input, shape index: {}]
  %s1 = inlined_call_operand.vmem [shape: bf16[32,96], index: 1, kind: input, shape index: {}]
  %s2 = inlined_call_operand.vmem [shape: f32[1,96], index: 2, kind: input, shape index: {}]
  %s3 = inlined_call_operand.vmem [shape: bf16[32,32], index: 3, kind: input, shape index: {}]
  %s4 = inlined_call_operand.hbm [shape: bf16[32,64], index: 4, kind: input, shape index: {}]
  %s5 = inlined_call_operand.vmem [shape: f32[1,64], index: 5, kind: input, shape index: {}]
  %s6 = inlined_call_operand.vmem [shape: bf16[64,32], index: 6, kind: input, shape index: {}]
  %s7 = inlined_call_operand.vmem [shape: f32[6,32], index: 7, kind: input, shape index: {}]
  %s8 = inlined_call_operand.hbm [shape: f32[2,8,32], index: 8, kind: output, shape index: {}]
  %s9 = sld [smem:[#allocation0]]
  $region69: #{tpu_custom_call.1} parent=0
    _
  %s11 = ssub.s32 1, %s9
  %s12 = scalar_select 0, %s11, %s9
  $region1: #{tpu_custom_call.1} parent=0
    #allocation2 [shape = 'u8[8192]{0}', space=vmem, size = 0x2000, scoped, tag = 'input window, operand 4, single buffered']
    #allocation3 [shape = 's32[2]{0}', space=sflag, size = 0x8, scoped, tag = 'scoped memory for tpu_custom_call.1']
    #allocation4 [shape = 's32[2]{0}', space=sflag, size = 0x8, scoped, tag = 'scoped memory for tpu_custom_call.1']
    #allocation5 [shape = 'u8[8192]{0}', space=vmem, size = 0x2000, scoped, tag = 'output window, operand 0']
    %13 = vsyncpa [#allocation3], 0
    %14 = vsyncpa [#allocation4], 0
    %s15 = scalar_lea.sflag [#allocation4], 1
    %16 = vsyncpa %s15, 0
    loop: start=0, step=1, limit=4
    $region2: #{tpu_custom_call.1} parent=1 // loop_pre_header
      _
    $region3: #{tpu_custom_call.1} parent=1 // loop_header
      %s18 = sphi 0, %s22
      %p19 = scmp.ge.s32.totalorder %s18, 4
      %s28 = sphi 0, %s30
      %s31 = sphi 0, %s28
      %s32 = sphi 0, %s31
      %s48 = sphi 0, %s32
      %s52 = sphi 0, %s52
      %s54 = sphi 0, %s52
      %s55 = sphi 0, %s54
      %s69 = sphi 0, %s55
      %s73 = sphi 0, %s73
      %s75 = sphi 0, %s73
      %s76 = sphi 0, %s75
      %s90 = sphi 0, %s76
      %s94 = sphi 0, %s94
      %s96 = sphi 0, %s94
      %s97 = sphi 0, %s96
      %s111 = sphi 0, %s97
      %s115 = sphi 0, %s115
      %s117 = sphi 0, %s115
      %s118 = sphi 0, %s117
      %s132 = sphi 0, %s118
      %s136 = sphi 0, %s136
      %s138 = sphi 0, %s136
      %s139 = sphi 0, %s138
      %s153 = sphi 0, %s139
      %s157 = sphi 0, %s157
      %s159 = sphi 0, %s157
      %s160 = sphi 0, %s159
      %s174 = sphi 0, %s160
      %s178 = sphi 0, %s178
      %s180 = sphi 0, %s178
      %s181 = sphi 0, %s180
      %s195 = sphi 0, %s181
      %s201 = sphi 0, %s203
      %s204 = sphi 0, %s201
      %s205 = sphi 0, %s204
      %s221 = sphi 0, %s205
    $region4: #{tpu_custom_call.1} parent=1 // loop_header_branch
      %21 = sbr.rel (%p19) target = $region8
    $region5: #{tpu_custom_call.1} parent=1 // loop_body
      %s23 = ssub.s32 %s18, 1
      %s24 = ssub.s32 %s18, 2
      %s25 = sadd.s32 %s18, 1
      %s26 = ssub.s32 %s18, %s25
      %p27 = scmp.eq.s32.totalorder %s26, 0
      %s29 = sadd.s32 %s28, 1
      %s30 = scalar_select %p27, %s28, %s29
      %p33 = pneg %p27
      %p34 = scmp.eq.s32.totalorder %s18, 1
      %p35 = por %p33, %p34
      %p36 = scmp.ne.s32.totalorder %s28, %s31
      %p37 = scmp.eq.s32.totalorder %s18, 0
      %p38 = por %p36, %p37
      %p39 = scmp.ne.s32.totalorder %s28, %s31
      %p40 = scmp.eq.s32.totalorder %s23, 1
      %p41 = por %p39, %p40
      %p42 = scmp.ne.s32.totalorder %s31, %s32
      %p43 = scmp.eq.s32.totalorder %s23, 0
      %p44 = por %p42, %p43
      %p45 = scmp.ne.s32.totalorder %s31, %s32
      %p46 = scmp.eq.s32.totalorder %s24, 1
      %p47 = por %p45, %p46
      %p49 = scmp.ne.s32.totalorder %s32, %s48
      %p50 = scmp.eq.s32.totalorder %s24, 0
      %p51 = por %p49, %p50
      %s53 = sadd.s32 %s52, 1
      %p56 = scmp.eq.s32.totalorder %s18, 1
      %p57 = scmp.ne.s32.totalorder %s52, %s54
      %p58 = scmp.eq.s32.totalorder %s18, 0
      %p59 = por %p57, %p58
      %p60 = scmp.ne.s32.totalorder %s52, %s54
      %p61 = scmp.eq.s32.totalorder %s23, 1
      %p62 = por %p60, %p61
      %p63 = scmp.ne.s32.totalorder %s54, %s55
      %p64 = scmp.eq.s32.totalorder %s23, 0
      %p65 = por %p63, %p64
      %p66 = scmp.ne.s32.totalorder %s54, %s55
      %p67 = scmp.eq.s32.totalorder %s24, 1
      %p68 = por %p66, %p67
      %p70 = scmp.ne.s32.totalorder %s55, %s69
      %p71 = scmp.eq.s32.totalorder %s24, 0
      %p72 = por %p70, %p71
      %s74 = sadd.s32 %s73, 1
      %p77 = scmp.eq.s32.totalorder %s18, 1
      %p78 = scmp.ne.s32.totalorder %s73, %s75
      %p79 = scmp.eq.s32.totalorder %s18, 0
      %p80 = por %p78, %p79
      %p81 = scmp.ne.s32.totalorder %s73, %s75
      %p82 = scmp.eq.s32.totalorder %s23, 1
      %p83 = por %p81, %p82
      %p84 = scmp.ne.s32.totalorder %s75, %s76
      %p85 = scmp.eq.s32.totalorder %s23, 0
      %p86 = por %p84, %p85
      %p87 = scmp.ne.s32.totalorder %s75, %s76
      %p88 = scmp.eq.s32.totalorder %s24, 1
      %p89 = por %p87, %p88
      %p91 = scmp.ne.s32.totalorder %s76, %s90
      %p92 = scmp.eq.s32.totalorder %s24, 0
      %p93 = por %p91, %p92
      %s95 = sadd.s32 %s94, 1
      %p98 = scmp.eq.s32.totalorder %s18, 1
      %p99 = scmp.ne.s32.totalorder %s94, %s96
      %p100 = scmp.eq.s32.totalorder %s18, 0
      %p101 = por %p99, %p100
      %p102 = scmp.ne.s32.totalorder %s94, %s96
      %p103 = scmp.eq.s32.totalorder %s23, 1
      %p104 = por %p102, %p103
      %p105 = scmp.ne.s32.totalorder %s96, %s97
      %p106 = scmp.eq.s32.totalorder %s23, 0
      %p107 = por %p105, %p106
      %p108 = scmp.ne.s32.totalorder %s96, %s97
      %p109 = scmp.eq.s32.totalorder %s24, 1
      %p110 = por %p108, %p109
      %p112 = scmp.ne.s32.totalorder %s97, %s111
      %p113 = scmp.eq.s32.totalorder %s24, 0
      %p114 = por %p112, %p113
      %s116 = sadd.s32 %s115, 1
      %p119 = scmp.eq.s32.totalorder %s18, 1
      %p120 = scmp.ne.s32.totalorder %s115, %s117
      %p121 = scmp.eq.s32.totalorder %s18, 0
      %p122 = por %p120, %p121
      %p123 = scmp.ne.s32.totalorder %s115, %s117
      %p124 = scmp.eq.s32.totalorder %s23, 1
      %p125 = por %p123, %p124
      %p126 = scmp.ne.s32.totalorder %s117, %s118
      %p127 = scmp.eq.s32.totalorder %s23, 0
      %p128 = por %p126, %p127
      %p129 = scmp.ne.s32.totalorder %s117, %s118
      %p130 = scmp.eq.s32.totalorder %s24, 1
      %p131 = por %p129, %p130
      %p133 = scmp.ne.s32.totalorder %s118, %s132
      %p134 = scmp.eq.s32.totalorder %s24, 0
      %p135 = por %p133, %p134
      %s137 = sadd.s32 %s136, 1
      %p140 = scmp.eq.s32.totalorder %s18, 1
      %p141 = scmp.ne.s32.totalorder %s136, %s138
      %p142 = scmp.eq.s32.totalorder %s18, 0
      %p143 = por %p141, %p142
      %p144 = scmp.ne.s32.totalorder %s136, %s138
      %p145 = scmp.eq.s32.totalorder %s23, 1
      %p146 = por %p144, %p145
      %p147 = scmp.ne.s32.totalorder %s138, %s139
      %p148 = scmp.eq.s32.totalorder %s23, 0
      %p149 = por %p147, %p148
      %p150 = scmp.ne.s32.totalorder %s138, %s139
      %p151 = scmp.eq.s32.totalorder %s24, 1
      %p152 = por %p150, %p151
      %p154 = scmp.ne.s32.totalorder %s139, %s153
      %p155 = scmp.eq.s32.totalorder %s24, 0
      %p156 = por %p154, %p155
      %s158 = sadd.s32 %s157, 1
      %p161 = scmp.eq.s32.totalorder %s18, 1
      %p162 = scmp.ne.s32.totalorder %s157, %s159
      %p163 = scmp.eq.s32.totalorder %s18, 0
      %p164 = por %p162, %p163
      %p165 = scmp.ne.s32.totalorder %s157, %s159
      %p166 = scmp.eq.s32.totalorder %s23, 1
      %p167 = por %p165, %p166
      %p168 = scmp.ne.s32.totalorder %s159, %s160
      %p169 = scmp.eq.s32.totalorder %s23, 0
      %p170 = por %p168, %p169
      %p171 = scmp.ne.s32.totalorder %s159, %s160
      %p172 = scmp.eq.s32.totalorder %s24, 1
      %p173 = por %p171, %p172
      %p175 = scmp.ne.s32.totalorder %s160, %s174
      %p176 = scmp.eq.s32.totalorder %s24, 0
      %p177 = por %p175, %p176
      %s179 = sadd.s32 %s178, 1
      %p182 = scmp.eq.s32.totalorder %s18, 1
      %p183 = scmp.ne.s32.totalorder %s178, %s180
      %p184 = scmp.eq.s32.totalorder %s18, 0
      %p185 = por %p183, %p184
      %p186 = scmp.ne.s32.totalorder %s178, %s180
      %p187 = scmp.eq.s32.totalorder %s23, 1
      %p188 = por %p186, %p187
      %p189 = scmp.ne.s32.totalorder %s180, %s181
      %p190 = scmp.eq.s32.totalorder %s23, 0
      %p191 = por %p189, %p190
      %p192 = scmp.ne.s32.totalorder %s180, %s181
      %p193 = scmp.eq.s32.totalorder %s24, 1
      %p194 = por %p192, %p193
      %p196 = scmp.ne.s32.totalorder %s181, %s195
      %p197 = scmp.eq.s32.totalorder %s24, 0
      %p198 = por %p196, %p197
      %s199 = ssub.s32 %s18, %s25
      %p200 = scmp.eq.s32.totalorder %s199, 0
      %s202 = sadd.s32 %s201, 1
      %s203 = scalar_select %p200, %s201, %s202
      %p206 = pneg %p200
      %p207 = scmp.eq.s32.totalorder %s18, 1
      %p208 = por %p206, %p207
      %p209 = scmp.ne.s32.totalorder %s201, %s204
      %p210 = scmp.eq.s32.totalorder %s18, 0
      %p211 = por %p209, %p210
      %p212 = scmp.ne.s32.totalorder %s201, %s204
      %p213 = scmp.eq.s32.totalorder %s23, 1
      %p214 = por %p212, %p213
      %p215 = scmp.ne.s32.totalorder %s204, %s205
      %p216 = scmp.eq.s32.totalorder %s23, 0
      %p217 = por %p215, %p216
      %p218 = scmp.ne.s32.totalorder %s204, %s205
      %p219 = scmp.eq.s32.totalorder %s24, 1
      %p220 = por %p218, %p219
      %p222 = scmp.ne.s32.totalorder %s205, %s221
      %p223 = scmp.eq.s32.totalorder %s24, 0
      %p224 = por %p222, %p223
      %p225 = scmp.le.s32.totalorder 1, %s18
      %p226 = scmp.lt.s32.totalorder %s18, 3
      %p227 = pnand %p225, %p226
      %p228 = pneg %p227
      // Predicated region
      $region9: #{tpu_custom_call.1} parent=5 // pred_check
        _
      $region10: #{tpu_custom_call.1} parent=5 // pred_check_branch
        %230 = sbr.rel (%p227) target = $region12
      $region11: #{tpu_custom_call.1} parent=5 // pred_region
        %s231 = ssub.s32 %s18, 1
        // Predicated region
        $region13: #{tpu_custom_call.1} parent=11 // pred_check
          %p232 = pneg %p65
        $region14: #{tpu_custom_call.1} parent=11 // pred_check_branch
          %234 = sbr.rel (%p232) target = $region16
        $region15: #{tpu_custom_call.1} parent=11 // pred_region
          _
        $region16: #{tpu_custom_call.1} parent=11 // pred_fallthru
          _
        // Predicated region
        $region17: #{tpu_custom_call.1} parent=11 // pred_check
          %p235 = pneg %p86
        $region18: #{tpu_custom_call.1} parent=11 // pred_check_branch
          %237 = sbr.rel (%p235) target = $region20
        $region19: #{tpu_custom_call.1} parent=11 // pred_region
          _
        $region20: #{tpu_custom_call.1} parent=11 // pred_fallthru
          _
        // Predicated region
        $region21: #{tpu_custom_call.1} parent=11 // pred_check
          %p238 = pneg %p107
        $region22: #{tpu_custom_call.1} parent=11 // pred_check_branch
          %240 = sbr.rel (%p238) target = $region24
        $region23: #{tpu_custom_call.1} parent=11 // pred_region
          _
        $region24: #{tpu_custom_call.1} parent=11 // pred_fallthru
          _
        // Predicated region
        $region25: #{tpu_custom_call.1} parent=11 // pred_check
          %p241 = pneg %p128
        $region26: #{tpu_custom_call.1} parent=11 // pred_check_branch
          %243 = sbr.rel (%p241) target = $region28
        $region27: #{tpu_custom_call.1} parent=11 // pred_region
          %s245 = ssub.s32 256, 256
          %246 = vsyncadd [#allocation3], %s245
          %s247 = sshll.u32 [#allocation2], 4
          %s248 = int_to_ptr.vmem [resolvable:$true] %s247
          %253 = dma.hbm_to_vmem [thread:$0]  %s4, 256, %s248, [#allocation3], 64, 64, 4
        $region28: #{tpu_custom_call.1} parent=11 // pred_fallthru
          _
        // Predicated region
        $region29: #{tpu_custom_call.1} parent=11 // pred_check
          %p254 = pneg %p149
        $region30: #{tpu_custom_call.1} parent=11 // pred_check_branch
          %256 = sbr.rel (%p254) target = $region32
        $region31: #{tpu_custom_call.1} parent=11 // pred_region
          _
        $region32: #{tpu_custom_call.1} parent=11 // pred_fallthru
          _
        // Predicated region
        $region33: #{tpu_custom_call.1} parent=11 // pred_check
          %p257 = pneg %p170
        $region34: #{tpu_custom_call.1} parent=11 // pred_check_branch
          %259 = sbr.rel (%p257) target = $region36
        $region35: #{tpu_custom_call.1} parent=11 // pred_region
          _
        $region36: #{tpu_custom_call.1} parent=11 // pred_fallthru
          _
        // Predicated region
        $region37: #{tpu_custom_call.1} parent=11 // pred_check
          %p260 = pneg %p191
        $region38: #{tpu_custom_call.1} parent=11 // pred_check_branch
          %262 = sbr.rel (%p260) target = $region40
        $region39: #{tpu_custom_call.1} parent=11 // pred_region
          _
        $region40: #{tpu_custom_call.1} parent=11 // pred_fallthru
          _
      $region12: #{tpu_custom_call.1} parent=5 // pred_fallthru
        _
      %p263 = scmp.lt.s32.totalorder %s18, 2
      // Predicated region
      $region41: #{tpu_custom_call.1} parent=5 // pred_check
        %p264 = pneg %p263
      $region42: #{tpu_custom_call.1} parent=5 // pred_check_branch
        %266 = sbr.rel (%p264) target = $region44
      $region43: #{tpu_custom_call.1} parent=5 // pred_region
        // Predicated region
        $region45: #{tpu_custom_call.1} parent=43 // pred_check
          %p267 = pneg %p38
        $region46: #{tpu_custom_call.1} parent=43 // pred_check_branch
          %269 = sbr.rel (%p267) target = $region48
        $region47: #{tpu_custom_call.1} parent=43 // pred_region
          %p270 = scmp.lt.s32.totalorder %s18, 1
          %s271 = scalar_select %p270, %s18, 1
          %s272 = smul.addr %s271, 8
          %s273 = scalar_lea.vmem %s0, %s272
        $region48: #{tpu_custom_call.1} parent=43 // pred_fallthru
          _
      $region44: #{tpu_custom_call.1} parent=5 // pred_fallthru
        _
      %p274 = scmp.le.s32.totalorder 1, %s18
      %p275 = scmp.lt.s32.totalorder %s18, 3
      %p276 = pnand %p274, %p275
      %p277 = pneg %p276
      // Predicated region
      $region49: #{tpu_custom_call.1} parent=5 // pred_check
        _
      $region50: #{tpu_custom_call.1} parent=5 // pred_check_branch
        %279 = sbr.rel (%p276) target = $region52
      $region51: #{tpu_custom_call.1} parent=5 // pred_region
        %s280 = ssub.s32 %s18, 1
        // Predicated region
        $region53: #{tpu_custom_call.1} parent=51 // pred_check
          %p281 = pneg %p128
        $region54: #{tpu_custom_call.1} parent=51 // pred_check_branch
          %283 = sbr.rel (%p281) target = $region56
        $region55: #{tpu_custom_call.1} parent=51 // pred_region
          %284 = dma.done [#allocation3], 256
        $region56: #{tpu_custom_call.1} parent=51 // pred_fallthru
          _
        %p285 = scmp.lt.s32.totalorder %s23, 1
        %s286 = scalar_select %p285, %s23, 1
        %s287 = smul.addr %s286, 8
        %s288 = scalar_lea.vmem %s0, %s287
        %p289 = pneg %p44
        %p290 = pneg %p41
        %p291 = pneg %p65
        %p292 = pneg %p62
        %p293 = pneg %p86
        %p294 = pneg %p83
        %p295 = pneg %p107
        %p296 = pneg %p104
        %p297 = pneg %p128
        %p298 = pneg %p125
        %p299 = pneg %p149
        %p300 = pneg %p146
        %p301 = pneg %p170
        %p302 = pneg %p167
        %p303 = pneg %p191
        %p304 = pneg %p188
        %p305 = pneg %p217
        %p306 = pneg %p214
        %s307 = sand.u32 %s204, 1
        %s308 = scalar_lea.sflag [#allocation4], %s307
        %s309 = sand.u32 %s204, 1
        %s310 = smul.addr %s309, 8
        %s311 = scalar_lea.vmem [#allocation5], %s310
        %p312 = scmp.lt.s32.totalorder %s23, 1
        %s313 = scalar_select %p312, %s23, 1
        %s314 = smul.addr %s313, 8
        %s315 = scalar_lea.vmem %s0, %s314
        %v317 = vld [vmem:[%s315] sm:$0xff]
        %v318 = vpack.c.bf16 %v317, %v317
        %v319 = vld [vmem:[%s1] sm:$0xf]
        %v320 = vld [vmem:[%s1 + $0x4] sm:$0xf]
        %v321 = vld [vmem:[%s1 + $0x8] sm:$0xf]
        %v322 = vld [vmem:[%s1 + $0xc] sm:$0xf]
        %v323 = vld [vmem:[%s2] sm:$0x1]
        %v325 = vlaneseq
        %v326 = vshrl.u32 %v325, 7
        %v327 = vsub.s32 0, %v326
        %v328 = vrot.slane %v323, %v327
        %v334 = vunpack.c.l.b16 %v319
        %v335 = vunpack.c.l.b16 %v320
        %v336 = vunpack.c.l.b16 %v321
        %v337 = vunpack.c.l.b16 %v322
        %v338 = vpack.c.b16 %v335, %v334
        %v339 = vpack.c.b16 %v337, %v336
        %vm342 = vcmask 261120
        %v344 = vsel %vm342, %v318, 0
        %346 = vmatprep.subr.bf16.mxu0 0
        %347 = vmatpush1.bf16.msra.mxu0 %v338
        %348 = vmatprep.subr.bf16.mxu0 0
        %349 = vmatpush1.bf16.msra.mxu0 %v339
        %350 = vmatprep.subr.bf16.mxu0 0
        %351 = vmatpush1.bf16.msra.mxu0 0
        %352 = vmatprep.subr.bf16.mxu0 0
        %353 = vmatpush1.bf16.msra.mxu0 0
        %354 = vmatprep.subr.bf16.mxu0 0
        %355 = vmatpush1.bf16.msra.mxu0 0
        %356 = vmatprep.subr.bf16.mxu0 0
        %357 = vmatpush1.bf16.msra.mxu0 0
        %358 = vmatprep.subr.bf16.mxu0 0
        %359 = vmatpush1.bf16.msra.mxu0 0
        %360 = vmatprep.subr.bf16.mxu0 0
        %361 = vmatpush1.bf16.msra.mxu0 0
        %362 = vmatprep.subr.bf16.mxu0 0
        %363 = vmatpush1.bf16.msra.mxu0 0
        %364 = vmatprep.subr.bf16.mxu0 0
        %365 = vmatpush1.bf16.msra.mxu0 0
        %366 = vmatprep.subr.bf16.mxu0 0
        %367 = vmatpush1.bf16.msra.mxu0 0
        %368 = vmatprep.subr.bf16.mxu0 0
        %369 = vmatpush1.bf16.msra.mxu0 0
        %370 = vmatprep.subr.bf16.mxu0 0
        %371 = vmatpush1.bf16.msra.mxu0 0
        %372 = vmatprep.subr.bf16.mxu0 0
        %373 = vmatpush1.bf16.msra.mxu0 0
        %374 = vmatprep.subr.bf16.mxu0 0
        %375 = vmatpush1.bf16.msra.mxu0 0
        %376 = vmatprep.subr.bf16.mxu0 0
        %377 = vmatpush1.bf16.msra.mxu0 0
        %378 = vmatprep.mubr.bf16.mxu0 0
        %379 = vmatmul.mubr.bf16.gmra.mrb[0].mxu0 %v344
        %v380 = vpop.f32.mrb[0].mxu0
        %v381 = vadd.f32 %v328, %v380
        %v382 = vpop.f32.mrb[0].mxu0
        %v383 = vpop.f32.mrb[0].mxu0
        %v384 = vpop.f32.mrb[0].mxu0
        %385 = vdwg.mxu0
        %386 = vrot.lane.b32.xlu0 %v338, 96
        %v387 = vpop.permute.xlu0 %386
        %388 = vrot.lane.b32.xlu0 %v339, 96
        %v389 = vpop.permute.xlu0 %388
        %392 = vrot.lane.b32.xlu0 %v328, 96
        %v393 = vpop.permute.xlu0 %392
        %395 = vmatprep.subr.bf16.mxu0 0
        %396 = vmatpush1.bf16.msra.mxu0 %v387
        %397 = vmatprep.subr.bf16.mxu0 0
        %398 = vmatpush1.bf16.msra.mxu0 %v389
        %399 = vmatprep.subr.bf16.mxu0 0
        %400 = vmatpush1.bf16.msra.mxu0 0
        %401 = vmatprep.subr.bf16.mxu0 0
        %402 = vmatpush1.bf16.msra.mxu0 0
        %403 = vmatprep.subr.bf16.mxu0 0
        %404 = vmatpush1.bf16.msra.mxu0 0
        %405 = vmatprep.subr.bf16.mxu0 0
        %406 = vmatpush1.bf16.msra.mxu0 0
        %407 = vmatprep.subr.bf16.mxu0 0
        %408 = vmatpush1.bf16.msra.mxu0 0
        %409 = vmatprep.subr.bf16.mxu0 0
        %410 = vmatpush1.bf16.msra.mxu0 0
        %411 = vmatprep.subr.bf16.mxu0 0
        %412 = vmatpush1.bf16.msra.mxu0 0
        %413 = vmatprep.subr.bf16.mxu0 0
        %414 = vmatpush1.bf16.msra.mxu0 0
        %415 = vmatprep.subr.bf16.mxu0 0
        %416 = vmatpush1.bf16.msra.mxu0 0
        %417 = vmatprep.subr.bf16.mxu0 0
        %418 = vmatpush1.bf16.msra.mxu0 0
        %419 = vmatprep.subr.bf16.mxu0 0
        %420 = vmatpush1.bf16.msra.mxu0 0
        %421 = vmatprep.subr.bf16.mxu0 0
        %422 = vmatpush1.bf16.msra.mxu0 0
        %423 = vmatprep.subr.bf16.mxu0 0
        %424 = vmatpush1.bf16.msra.mxu0 0
        %425 = vmatprep.subr.bf16.mxu0 0
        %426 = vmatpush1.bf16.msra.mxu0 0
        %427 = vmatprep.mubr.bf16.mxu0 0
        %428 = vmatmul.mubr.bf16.gmra.mrb[0].mxu0 %v344
        %v429 = vpop.f32.mrb[0].mxu0
        %v430 = vadd.f32 %v393, %v429
        %v431 = vpop.f32.mrb[0].mxu0
        %v432 = vpop.f32.mrb[0].mxu0
        %v433 = vpop.f32.mrb[0].mxu0
        %434 = vdwg.mxu0
        %435 = vrot.lane.b32.xlu0 %v338, 64
        %v436 = vpop.permute.xlu0 %435
        %437 = vrot.lane.b32.xlu0 %v339, 64
        %v438 = vpop.permute.xlu0 %437
        %441 = vrot.lane.b32.xlu0 %v328, 64
        %v442 = vpop.permute.xlu0 %441
        %444 = vmatprep.subr.bf16.mxu0 0
        %445 = vmatpush1.bf16.msra.mxu0 %v436
        %446 = vmatprep.subr.bf16.mxu0 0
        %447 = vmatpush1.bf16.msra.mxu0 %v438
        %448 = vmatprep.subr.bf16.mxu0 0
        %449 = vmatpush1.bf16.msra.mxu0 0
        %450 = vmatprep.subr.bf16.mxu0 0
        %451 = vmatpush1.bf16.msra.mxu0 0
        %452 = vmatprep.subr.bf16.mxu0 0
        %453 = vmatpush1.bf16.msra.mxu0 0
        %454 = vmatprep.subr.bf16.mxu0 0
        %455 = vmatpush1.bf16.msra.mxu0 0
        %456 = vmatprep.subr.bf16.mxu0 0
        %457 = vmatpush1.bf16.msra.mxu0 0
        %458 = vmatprep.subr.bf16.mxu0 0
        %459 = vmatpush1.bf16.msra.mxu0 0
        %460 = vmatprep.subr.bf16.mxu0 0
        %461 = vmatpush1.bf16.msra.mxu0 0
        %462 = vmatprep.subr.bf16.mxu0 0
        %463 = vmatpush1.bf16.msra.mxu0 0
        %464 = vmatprep.subr.bf16.mxu0 0
        %465 = vmatpush1.bf16.msra.mxu0 0
        %466 = vmatprep.subr.bf16.mxu0 0
        %467 = vmatpush1.bf16.msra.mxu0 0
        %468 = vmatprep.subr.bf16.mxu0 0
        %469 = vmatpush1.bf16.msra.mxu0 0
        %470 = vmatprep.subr.bf16.mxu0 0
        %471 = vmatpush1.bf16.msra.mxu0 0
        %472 = vmatprep.subr.bf16.mxu0 0
        %473 = vmatpush1.bf16.msra.mxu0 0
        %474 = vmatprep.subr.bf16.mxu0 0
        %475 = vmatpush1.bf16.msra.mxu0 0
        %476 = vmatprep.mubr.bf16.mxu0 0
        %477 = vmatmul.mubr.bf16.gmra.mrb[0].mxu0 %v344
        %v478 = vpop.f32.mrb[0].mxu0
        %v479 = vadd.f32 %v442, %v478
        %v480 = vpop.f32.mrb[0].mxu0
        %v481 = vpop.f32.mrb[0].mxu0
        %v482 = vpop.f32.mrb[0].mxu0
        %483 = vdwg.mxu0
        %v484 = vld [vmem:[%s7] sm:$0x3f]
        %v485 = vpack.c.bf16 %v381, %v381
        %v486 = vpack.c.bf16 %v430, %v430
        %v487 = vpack.c.bf16 %v479, %v479
        %vm488 = vcmask 64512
        %v490 = vsel %vm488, %v485, 0
        %v493 = vsel %vm488, %v486, 0
        %495 = vmatprep.subr.bf16.mxu0 0
        %496 = vmatpush1.bf16.xpose.msra.mxu0 %v493
        %497 = vmatprep.subr.bf16.mxu0 0
        %498 = vmatpush1.bf16.xpose.msra.mxu0 0
        %499 = vmatprep.subr.bf16.mxu0 0
        %500 = vmatpush1.bf16.xpose.msra.mxu0 0
        %501 = vmatprep.subr.bf16.mxu0 0
        %502 = vmatpush1.bf16.xpose.msra.mxu0 0
        %503 = vmatprep.subr.bf16.mxu0 0
        %504 = vmatpush1.bf16.xpose.msra.mxu0 0
        %505 = vmatprep.subr.bf16.mxu0 0
        %506 = vmatpush1.bf16.xpose.msra.mxu0 0
        %507 = vmatprep.subr.bf16.mxu0 0
        %508 = vmatpush1.bf16.xpose.msra.mxu0 0
        %509 = vmatprep.subr.bf16.mxu0 0
        %510 = vmatpush1.bf16.xpose.msra.mxu0 0
        %511 = vmatprep.subr.bf16.mxu0 0
        %512 = vmatpush1.bf16.xpose.msra.mxu0 0
        %513 = vmatprep.subr.bf16.mxu0 0
        %514 = vmatpush1.bf16.xpose.msra.mxu0 0
        %515 = vmatprep.subr.bf16.mxu0 0
        %516 = vmatpush1.bf16.xpose.msra.mxu0 0
        %517 = vmatprep.subr.bf16.mxu0 0
        %518 = vmatpush1.bf16.xpose.msra.mxu0 0
        %519 = vmatprep.subr.bf16.mxu0 0
        %520 = vmatpush1.bf16.xpose.msra.mxu0 0
        %521 = vmatprep.subr.bf16.mxu0 0
        %522 = vmatpush1.bf16.xpose.msra.mxu0 0
        %523 = vmatprep.subr.bf16.mxu0 0
        %524 = vmatpush1.bf16.xpose.msra.mxu0 0
        %525 = vmatprep.subr.bf16.mxu0 0
        %526 = vmatpush1.bf16.xpose.msra.mxu0 0
        %527 = vmatprep.mubr.bf16.mxu0 0
        %528 = vmatmul.mubr.bf16.gmra.mrb[0].mxu0 %v490
        %v529 = vpop.f32.mrb[0].mxu0
        %v530 = vadd.f32 0.0, %v529
        %v531 = vpop.f32.mrb[0].mxu0
        %v532 = vpop.f32.mrb[0].mxu0
        %v533 = vpop.f32.mrb[0].mxu0
        %534 = vdwg.mxu0
        %v535 = vmul.f32 %v530, 0.35355338
        %v536 = vsel %vm488, %v535, -inf
        %537 = vmax.xlane.f32.xlu0 %v536
        %v538 = vpop.xlane.xlu0 %537
        %v539 = vsub.f32 %v535, %v538
        %v540 = vmul.f32 %v539, 1.442695
        %v541 = vpow.pop %v540
        %v542 = vsel %vm488, %v541, 0.0
        %543 = vadd.xlane.f32.xlu0 %v542
        %v544 = vpop.xlane.xlu0 %543
        %v545 = vrcp.pop %v544
        %v546 = vmul.f32 %v541, %v545
        %v547 = vpack.c.bf16 %v546, %v546
        %v549 = vsel %vm488, %v547, 0
        %vm551 = vcmask 1043456
        %v553 = vsel %vm551, %v487, 0
        %555 = vmatprep.subr.bf16.mxu0 0
        %556 = vmatpush1.bf16.msra.mxu0 %v553
        %557 = vmatprep.subr.bf16.mxu0 0
        %558 = vmatpush1.bf16.msra.mxu0 0
        %559 = vmatprep.subr.bf16.mxu0 0
        %560 = vmatpush1.bf16.msra.mxu0 0
        %561 = vmatprep.subr.bf16.mxu0 0
        %562 = vmatpush1.bf16.msra.mxu0 0
        %563 = vmatprep.subr.bf16.mxu0 0
        %564 = vmatpush1.bf16.msra.mxu0 0
        %565 = vmatprep.subr.bf16.mxu0 0
        %566 = vmatpush1.bf16.msra.mxu0 0
        %567 = vmatprep.subr.bf16.mxu0 0
        %568 = vmatpush1.bf16.msra.mxu0 0
        %569 = vmatprep.subr.bf16.mxu0 0
        %570 = vmatpush1.bf16.msra.mxu0 0
        %571 = vmatprep.subr.bf16.mxu0 0
        %572 = vmatpush1.bf16.msra.mxu0 0
        %573 = vmatprep.subr.bf16.mxu0 0
        %574 = vmatpush1.bf16.msra.mxu0 0
        %575 = vmatprep.subr.bf16.mxu0 0
        %576 = vmatpush1.bf16.msra.mxu0 0
        %577 = vmatprep.subr.bf16.mxu0 0
        %578 = vmatpush1.bf16.msra.mxu0 0
        %579 = vmatprep.subr.bf16.mxu0 0
        %580 = vmatpush1.bf16.msra.mxu0 0
        %581 = vmatprep.subr.bf16.mxu0 0
        %582 = vmatpush1.bf16.msra.mxu0 0
        %583 = vmatprep.subr.bf16.mxu0 0
        %584 = vmatpush1.bf16.msra.mxu0 0
        %585 = vmatprep.subr.bf16.mxu0 0
        %586 = vmatpush1.bf16.msra.mxu0 0
        %587 = vmatprep.mubr.bf16.mxu0 0
        %588 = vmatmul.mubr.bf16.gmra.mrb[0].mxu0 %v549
        %v589 = vpop.f32.mrb[0].mxu0
        %v590 = vadd.f32 0.0, %v589
        %v591 = vpop.f32.mrb[0].mxu0
        %v592 = vpop.f32.mrb[0].mxu0
        %v593 = vpop.f32.mrb[0].mxu0
        %594 = vdwg.mxu0
        %v595 = vpack.c.bf16 %v590, %v590
        %v596 = vld [vmem:[%s3] sm:$0xf]
        %598 = vrot.lane.b32.xlu0 %v485, 120
        %v599 = vpop.permute.xlu0 %598
        %601 = vrot.lane.b32.xlu0 %v486, 120
        %v602 = vpop.permute.xlu0 %601
        %v604 = vsel %vm488, %v599, 0
        %v607 = vsel %vm488, %v602, 0
        %609 = vmatprep.subr.bf16.mxu0 0
        %610 = vmatpush1.bf16.xpose.msra.mxu0 %v607
        %611 = vmatprep.subr.bf16.mxu0 0
        %612 = vmatpush1.bf16.xpose.msra.mxu0 0
        %613 = vmatprep.subr.bf16.mxu0 0
        %614 = vmatpush1.bf16.xpose.msra.mxu0 0
        %615 = vmatprep.subr.bf16.mxu0 0
        %616 = vmatpush1.bf16.xpose.msra.mxu0 0
        %617 = vmatprep.subr.bf16.mxu0 0
        %618 = vmatpush1.bf16.xpose.msra.mxu0 0
        %619 = vmatprep.subr.bf16.mxu0 0
        %620 = vmatpush1.bf16.xpose.msra.mxu0 0
        %621 = vmatprep.subr.bf16.mxu0 0
        %622 = vmatpush1.bf16.xpose.msra.mxu0 0
        %623 = vmatprep.subr.bf16.mxu0 0
        %624 = vmatpush1.bf16.xpose.msra.mxu0 0
        %625 = vmatprep.subr.bf16.mxu0 0
        %626 = vmatpush1.bf16.xpose.msra.mxu0 0
        %627 = vmatprep.subr.bf16.mxu0 0
        %628 = vmatpush1.bf16.xpose.msra.mxu0 0
        %629 = vmatprep.subr.bf16.mxu0 0
        %630 = vmatpush1.bf16.xpose.msra.mxu0 0
        %631 = vmatprep.subr.bf16.mxu0 0
        %632 = vmatpush1.bf16.xpose.msra.mxu0 0
        %633 = vmatprep.subr.bf16.mxu0 0
        %634 = vmatpush1.bf16.xpose.msra.mxu0 0
        %635 = vmatprep.subr.bf16.mxu0 0
        %636 = vmatpush1.bf16.xpose.msra.mxu0 0
        %637 = vmatprep.subr.bf16.mxu0 0
        %638 = vmatpush1.bf16.xpose.msra.mxu0 0
        %639 = vmatprep.subr.bf16.mxu0 0
        %640 = vmatpush1.bf16.xpose.msra.mxu0 0
        %641 = vmatprep.mubr.bf16.mxu0 0
        %642 = vmatmul.mubr.bf16.gmra.mrb[0].mxu0 %v604
        %v643 = vpop.f32.mrb[0].mxu0
        %v644 = vadd.f32 0.0, %v643
        %v645 = vpop.f32.mrb[0].mxu0
        %v646 = vpop.f32.mrb[0].mxu0
        %v647 = vpop.f32.mrb[0].mxu0
        %648 = vdwg.mxu0
        %v649 = vmul.f32 %v644, 0.35355338
        %v650 = vsel %vm488, %v649, -inf
        %651 = vmax.xlane.f32.xlu0 %v650
        %v652 = vpop.xlane.xlu0 %651
        %v653 = vsub.f32 %v649, %v652
        %v654 = vmul.f32 %v653, 1.442695
        %v655 = vpow.pop %v654
        %v656 = vsel %vm488, %v655, 0.0
        %657 = vadd.xlane.f32.xlu0 %v656
        %v658 = vpop.xlane.xlu0 %657
        %v659 = vrcp.pop %v658
        %v660 = vmul.f32 %v655, %v659
        %v661 = vpack.c.bf16 %v660, %v660
        %663 = vrot.lane.b32.xlu0 %v487, 120
        %v664 = vpop.permute.xlu0 %663
        %v666 = vsel %vm488, %v661, 0
        %v669 = vsel %vm551, %v664, 0
        %671 = vmatprep.subr.bf16.mxu0 0
        %672 = vmatpush1.bf16.msra.mxu0 %v669
        %673 = vmatprep.subr.bf16.mxu0 0
        %674 = vmatpush1.bf16.msra.mxu0 0
        %675 = vmatprep.subr.bf16.mxu0 0
        %676 = vmatpush1.bf16.msra.mxu0 0
        %677 = vmatprep.subr.bf16.mxu0 0
        %678 = vmatpush1.bf16.msra.mxu0 0
        %679 = vmatprep.subr.bf16.mxu0 0
        %680 = vmatpush1.bf16.msra.mxu0 0
        %681 = vmatprep.subr.bf16.mxu0 0
        %682 = vmatpush1.bf16.msra.mxu0 0
        %683 = vmatprep.subr.bf16.mxu0 0
        %684 = vmatpush1.bf16.msra.mxu0 0
        %685 = vmatprep.subr.bf16.mxu0 0
        %686 = vmatpush1.bf16.msra.mxu0 0
        %687 = vmatprep.subr.bf16.mxu0 0
        %688 = vmatpush1.bf16.msra.mxu0 0
        %689 = vmatprep.subr.bf16.mxu0 0
        %690 = vmatpush1.bf16.msra.mxu0 0
        %691 = vmatprep.subr.bf16.mxu0 0
        %692 = vmatpush1.bf16.msra.mxu0 0
        %693 = vmatprep.subr.bf16.mxu0 0
        %694 = vmatpush1.bf16.msra.mxu0 0
        %695 = vmatprep.subr.bf16.mxu0 0
        %696 = vmatpush1.bf16.msra.mxu0 0
        %697 = vmatprep.subr.bf16.mxu0 0
        %698 = vmatpush1.bf16.msra.mxu0 0
        %699 = vmatprep.subr.bf16.mxu0 0
        %700 = vmatpush1.bf16.msra.mxu0 0
        %701 = vmatprep.subr.bf16.mxu0 0
        %702 = vmatpush1.bf16.msra.mxu0 0
        %703 = vmatprep.mubr.bf16.mxu0 0
        %704 = vmatmul.mubr.bf16.gmra.mrb[0].mxu0 %v666
        %v705 = vpop.f32.mrb[0].mxu0
        %v706 = vadd.f32 0.0, %v705
        %v707 = vpop.f32.mrb[0].mxu0
        %v708 = vpop.f32.mrb[0].mxu0
        %v709 = vpop.f32.mrb[0].mxu0
        %710 = vdwg.mxu0
        %v711 = vpack.c.bf16 %v706, %v706
        %v712 = vld [vmem:[%s3 + $0x4] sm:$0xf]
        %v714 = vsel %vm488, %v711, 0
        %v717 = vsel %vm551, %v712, 0
        %719 = vmatprep.subr.bf16.mxu0 0
        %720 = vmatpush1.bf16.msra.mxu0 %v717
        %721 = vmatprep.subr.bf16.mxu0 0
        %722 = vmatpush1.bf16.msra.mxu0 0
        %723 = vmatprep.subr.bf16.mxu0 0
        %724 = vmatpush1.bf16.msra.mxu0 0
        %725 = vmatprep.subr.bf16.mxu0 0
        %726 = vmatpush1.bf16.msra.mxu0 0
        %727 = vmatprep.subr.bf16.mxu0 0
        %728 = vmatpush1.bf16.msra.mxu0 0
        %729 = vmatprep.subr.bf16.mxu0 0
        %730 = vmatpush1.bf16.msra.mxu0 0
        %731 = vmatprep.subr.bf16.mxu0 0
        %732 = vmatpush1.bf16.msra.mxu0 0
        %733 = vmatprep.subr.bf16.mxu0 0
        %734 = vmatpush1.bf16.msra.mxu0 0
        %735 = vmatprep.subr.bf16.mxu0 0
        %736 = vmatpush1.bf16.msra.mxu0 0
        %737 = vmatprep.subr.bf16.mxu0 0
        %738 = vmatpush1.bf16.msra.mxu0 0
        %739 = vmatprep.subr.bf16.mxu0 0
        %740 = vmatpush1.bf16.msra.mxu0 0
        %741 = vmatprep.subr.bf16.mxu0 0
        %742 = vmatpush1.bf16.msra.mxu0 0
        %743 = vmatprep.subr.bf16.mxu0 0
        %744 = vmatpush1.bf16.msra.mxu0 0
        %745 = vmatprep.subr.bf16.mxu0 0
        %746 = vmatpush1.bf16.msra.mxu0 0
        %747 = vmatprep.subr.bf16.mxu0 0
        %748 = vmatpush1.bf16.msra.mxu0 0
        %749 = vmatprep.subr.bf16.mxu0 0
        %750 = vmatpush1.bf16.msra.mxu0 0
        %751 = vmatprep.mubr.bf16.mxu0 0
        %752 = vmatmul.mubr.bf16.gmra.mrb[0].mxu0 %v714
        %v753 = vpop.f32.mrb[0].mxu0
        %v754 = vadd.f32 0.0, %v753
        %v755 = vpop.f32.mrb[0].mxu0
        %v756 = vpop.f32.mrb[0].mxu0
        %v757 = vpop.f32.mrb[0].mxu0
        %758 = vdwg.mxu0
        %v760 = vsel %vm488, %v595, 0
        %v763 = vsel %vm551, %v596, 0
        %765 = vmatprep.subr.bf16.mxu0 0
        %766 = vmatpush1.bf16.msra.mxu0 %v763
        %767 = vmatprep.subr.bf16.mxu0 0
        %768 = vmatpush1.bf16.msra.mxu0 0
        %769 = vmatprep.subr.bf16.mxu0 0
        %770 = vmatpush1.bf16.msra.mxu0 0
        %771 = vmatprep.subr.bf16.mxu0 0
        %772 = vmatpush1.bf16.msra.mxu0 0
        %773 = vmatprep.subr.bf16.mxu0 0
        %774 = vmatpush1.bf16.msra.mxu0 0
        %775 = vmatprep.subr.bf16.mxu0 0
        %776 = vmatpush1.bf16.msra.mxu0 0
        %777 = vmatprep.subr.bf16.mxu0 0
        %778 = vmatpush1.bf16.msra.mxu0 0
        %779 = vmatprep.subr.bf16.mxu0 0
        %780 = vmatpush1.bf16.msra.mxu0 0
        %781 = vmatprep.subr.bf16.mxu0 0
        %782 = vmatpush1.bf16.msra.mxu0 0
        %783 = vmatprep.subr.bf16.mxu0 0
        %784 = vmatpush1.bf16.msra.mxu0 0
        %785 = vmatprep.subr.bf16.mxu0 0
        %786 = vmatpush1.bf16.msra.mxu0 0
        %787 = vmatprep.subr.bf16.mxu0 0
        %788 = vmatpush1.bf16.msra.mxu0 0
        %789 = vmatprep.subr.bf16.mxu0 0
        %790 = vmatpush1.bf16.msra.mxu0 0
        %791 = vmatprep.subr.bf16.mxu0 0
        %792 = vmatpush1.bf16.msra.mxu0 0
        %793 = vmatprep.subr.bf16.mxu0 0
        %794 = vmatpush1.bf16.msra.mxu0 0
        %795 = vmatprep.subr.bf16.mxu0 0
        %796 = vmatpush1.bf16.msra.mxu0 0
        %797 = vmatprep.mubr.bf16.mxu0 0
        %798 = vmatmul.mubr.bf16.gmra.mrb[0].mxu0 %v760
        %v799 = vpop.f32.mrb[0].mxu0
        %v800 = vadd.f32 %v754, %v799
        %v801 = vpop.f32.mrb[0].mxu0
        %v802 = vpop.f32.mrb[0].mxu0
        %v803 = vpop.f32.mrb[0].mxu0
        %804 = vdwg.mxu0
        %805 = vrot.lane.b32.xlu0 %v485, 112
        %v806 = vpop.permute.xlu0 %805
        %807 = vrot.lane.b32.xlu0 %v486, 112
        %v808 = vpop.permute.xlu0 %807
        %v810 = vsel %vm488, %v806, 0
        %v813 = vsel %vm488, %v808, 0
        %815 = vmatprep.subr.bf16.mxu0 0
        %816 = vmatpush1.bf16.xpose.msra.mxu0 %v813
        %817 = vmatprep.subr.bf16.mxu0 0
        %818 = vmatpush1.bf16.xpose.msra.mxu0 0
        %819 = vmatprep.subr.bf16.mxu0 0
        %820 = vmatpush1.bf16.xpose.msra.mxu0 0
        %821 = vmatprep.subr.bf16.mxu0 0
        %822 = vmatpush1.bf16.xpose.msra.mxu0 0
        %823 = vmatprep.subr.bf16.mxu0 0
        %824 = vmatpush1.bf16.xpose.msra.mxu0 0
        %825 = vmatprep.subr.bf16.mxu0 0
        %826 = vmatpush1.bf16.xpose.msra.mxu0 0
        %827 = vmatprep.subr.bf16.mxu0 0
        %828 = vmatpush1.bf16.xpose.msra.mxu0 0
        %829 = vmatprep.subr.bf16.mxu0 0
        %830 = vmatpush1.bf16.xpose.msra.mxu0 0
        %831 = vmatprep.subr.bf16.mxu0 0
        %832 = vmatpush1.bf16.xpose.msra.mxu0 0
        %833 = vmatprep.subr.bf16.mxu0 0
        %834 = vmatpush1.bf16.xpose.msra.mxu0 0
        %835 = vmatprep.subr.bf16.mxu0 0
        %836 = vmatpush1.bf16.xpose.msra.mxu0 0
        %837 = vmatprep.subr.bf16.mxu0 0
        %838 = vmatpush1.bf16.xpose.msra.mxu0 0
        %839 = vmatprep.subr.bf16.mxu0 0
        %840 = vmatpush1.bf16.xpose.msra.mxu0 0
        %841 = vmatprep.subr.bf16.mxu0 0
        %842 = vmatpush1.bf16.xpose.msra.mxu0 0
        %843 = vmatprep.subr.bf16.mxu0 0
        %844 = vmatpush1.bf16.xpose.msra.mxu0 0
        %845 = vmatprep.subr.bf16.mxu0 0
        %846 = vmatpush1.bf16.xpose.msra.mxu0 0
        %847 = vmatprep.mubr.bf16.mxu0 0
        %848 = vmatmul.mubr.bf16.gmra.mrb[0].mxu0 %v810
        %v849 = vpop.f32.mrb[0].mxu0
        %v850 = vadd.f32 0.0, %v849
        %v851 = vpop.f32.mrb[0].mxu0
        %v852 = vpop.f32.mrb[0].mxu0
        %v853 = vpop.f32.mrb[0].mxu0
        %854 = vdwg.mxu0
        %v855 = vmul.f32 %v850, 0.35355338
        %v856 = vsel %vm488, %v855, -inf
        %857 = vmax.xlane.f32.xlu0 %v856
        %v858 = vpop.xlane.xlu0 %857
        %v859 = vsub.f32 %v855, %v858
        %v860 = vmul.f32 %v859, 1.442695
        %v861 = vpow.pop %v860
        %v862 = vsel %vm488, %v861, 0.0
        %863 = vadd.xlane.f32.xlu0 %v862
        %v864 = vpop.xlane.xlu0 %863
        %v865 = vrcp.pop %v864
        %v866 = vmul.f32 %v861, %v865
        %v867 = vpack.c.bf16 %v866, %v866
        %868 = vrot.lane.b32.xlu0 %v487, 112
        %v869 = vpop.permute.xlu0 %868
        %v871 = vsel %vm488, %v867, 0
        %v874 = vsel %vm551, %v869, 0
        %876 = vmatprep.subr.bf16.mxu0 0
        %877 = vmatpush1.bf16.msra.mxu0 %v874
        %878 = vmatprep.subr.bf16.mxu0 0
        %879 = vmatpush1.bf16.msra.mxu0 0
        %880 = vmatprep.subr.bf16.mxu0 0
        %881 = vmatpush1.bf16.msra.mxu0 0
        %882 = vmatprep.subr.bf16.mxu0 0
        %883 = vmatpush1.bf16.msra.mxu0 0
        %884 = vmatprep.subr.bf16.mxu0 0
        %885 = vmatpush1.bf16.msra.mxu0 0
        %886 = vmatprep.subr.bf16.mxu0 0
        %887 = vmatpush1.bf16.msra.mxu0 0
        %888 = vmatprep.subr.bf16.mxu0 0
        %889 = vmatpush1.bf16.msra.mxu0 0
        %890 = vmatprep.subr.bf16.mxu0 0
        %891 = vmatpush1.bf16.msra.mxu0 0
        %892 = vmatprep.subr.bf16.mxu0 0
        %893 = vmatpush1.bf16.msra.mxu0 0
        %894 = vmatprep.subr.bf16.mxu0 0
        %895 = vmatpush1.bf16.msra.mxu0 0
        %896 = vmatprep.subr.bf16.mxu0 0
        %897 = vmatpush1.bf16.msra.mxu0 0
        %898 = vmatprep.subr.bf16.mxu0 0
        %899 = vmatpush1.bf16.msra.mxu0 0
        %900 = vmatprep.subr.bf16.mxu0 0
        %901 = vmatpush1.bf16.msra.mxu0 0
        %902 = vmatprep.subr.bf16.mxu0 0
        %903 = vmatpush1.bf16.msra.mxu0 0
        %904 = vmatprep.subr.bf16.mxu0 0
        %905 = vmatpush1.bf16.msra.mxu0 0
        %906 = vmatprep.subr.bf16.mxu0 0
        %907 = vmatpush1.bf16.msra.mxu0 0
        %908 = vmatprep.mubr.bf16.mxu0 0
        %909 = vmatmul.mubr.bf16.gmra.mrb[0].mxu0 %v871
        %v910 = vpop.f32.mrb[0].mxu0
        %v911 = vadd.f32 0.0, %v910
        %v912 = vpop.f32.mrb[0].mxu0
        %v913 = vpop.f32.mrb[0].mxu0
        %v914 = vpop.f32.mrb[0].mxu0
        %915 = vdwg.mxu0
        %v916 = vpack.c.bf16 %v911, %v911
        %v917 = vld [vmem:[%s3 + $0x8] sm:$0xf]
        %v919 = vsel %vm488, %v916, 0
        %v922 = vsel %vm551, %v917, 0
        %924 = vmatprep.subr.bf16.mxu0 0
        %925 = vmatpush1.bf16.msra.mxu0 %v922
        %926 = vmatprep.subr.bf16.mxu0 0
        %927 = vmatpush1.bf16.msra.mxu0 0
        %928 = vmatprep.subr.bf16.mxu0 0
        %929 = vmatpush1.bf16.msra.mxu0 0
        %930 = vmatprep.subr.bf16.mxu0 0
        %931 = vmatpush1.bf16.msra.mxu0 0
        %932 = vmatprep.subr.bf16.mxu0 0
        %933 = vmatpush1.bf16.msra.mxu0 0
        %934 = vmatprep.subr.bf16.mxu0 0
        %935 = vmatpush1.bf16.msra.mxu0 0
        %936 = vmatprep.subr.bf16.mxu0 0
        %937 = vmatpush1.bf16.msra.mxu0 0
        %938 = vmatprep.subr.bf16.mxu0 0
        %939 = vmatpush1.bf16.msra.mxu0 0
        %940 = vmatprep.subr.bf16.mxu0 0
        %941 = vmatpush1.bf16.msra.mxu0 0
        %942 = vmatprep.subr.bf16.mxu0 0
        %943 = vmatpush1.bf16.msra.mxu0 0
        %944 = vmatprep.subr.bf16.mxu0 0
        %945 = vmatpush1.bf16.msra.mxu0 0
        %946 = vmatprep.subr.bf16.mxu0 0
        %947 = vmatpush1.bf16.msra.mxu0 0
        %948 = vmatprep.subr.bf16.mxu0 0
        %949 = vmatpush1.bf16.msra.mxu0 0
        %950 = vmatprep.subr.bf16.mxu0 0
        %951 = vmatpush1.bf16.msra.mxu0 0
        %952 = vmatprep.subr.bf16.mxu0 0
        %953 = vmatpush1.bf16.msra.mxu0 0
        %954 = vmatprep.subr.bf16.mxu0 0
        %955 = vmatpush1.bf16.msra.mxu0 0
        %956 = vmatprep.mubr.bf16.mxu0 0
        %957 = vmatmul.mubr.bf16.gmra.mrb[0].mxu0 %v919
        %v958 = vpop.f32.mrb[0].mxu0
        %v959 = vadd.f32 0.0, %v958
        %v960 = vpop.f32.mrb[0].mxu0
        %v961 = vpop.f32.mrb[0].mxu0
        %v962 = vpop.f32.mrb[0].mxu0
        %963 = vdwg.mxu0
        %v964 = vadd.f32 %v800, %v959
        %965 = vrot.lane.b32.xlu0 %v485, 104
        %v966 = vpop.permute.xlu0 %965
        %967 = vrot.lane.b32.xlu0 %v486, 104
        %v968 = vpop.permute.xlu0 %967
        %v970 = vsel %vm488, %v966, 0
        %v973 = vsel %vm488, %v968, 0
        %975 = vmatprep.subr.bf16.mxu0 0
        %976 = vmatpush1.bf16.xpose.msra.mxu0 %v973
        %977 = vmatprep.subr.bf16.mxu0 0
        %978 = vmatpush1.bf16.xpose.msra.mxu0 0
        %979 = vmatprep.subr.bf16.mxu0 0
        %980 = vmatpush1.bf16.xpose.msra.mxu0 0
        %981 = vmatprep.subr.bf16.mxu0 0
        %982 = vmatpush1.bf16.xpose.msra.mxu0 0
        %983 = vmatprep.subr.bf16.mxu0 0
        %984 = vmatpush1.bf16.xpose.msra.mxu0 0
        %985 = vmatprep.subr.bf16.mxu0 0
        %986 = vmatpush1.bf16.xpose.msra.mxu0 0
        %987 = vmatprep.subr.bf16.mxu0 0
        %988 = vmatpush1.bf16.xpose.msra.mxu0 0
        %989 = vmatprep.subr.bf16.mxu0 0
        %990 = vmatpush1.bf16.xpose.msra.mxu0 0
        %991 = vmatprep.subr.bf16.mxu0 0
        %992 = vmatpush1.bf16.xpose.msra.mxu0 0
        %993 = vmatprep.subr.bf16.mxu0 0
        %994 = vmatpush1.bf16.xpose.msra.mxu0 0
        %995 = vmatprep.subr.bf16.mxu0 0
        %996 = vmatpush1.bf16.xpose.msra.mxu0 0
        %997 = vmatprep.subr.bf16.mxu0 0
        %998 = vmatpush1.bf16.xpose.msra.mxu0 0
        %999 = vmatprep.subr.bf16.mxu0 0
        %1000 = vmatpush1.bf16.xpose.msra.mxu0 0
        %1001 = vmatprep.subr.bf16.mxu0 0
        %1002 = vmatpush1.bf16.xpose.msra.mxu0 0
        %1003 = vmatprep.subr.bf16.mxu0 0
        %1004 = vmatpush1.bf16.xpose.msra.mxu0 0
        %1005 = vmatprep.subr.bf16.mxu0 0
        %1006 = vmatpush1.bf16.xpose.msra.mxu0 0
        %1007 = vmatprep.mubr.bf16.mxu0 0
        %1008 = vmatmul.mubr.bf16.gmra.mrb[0].mxu0 %v970
        %v1009 = vpop.f32.mrb[0].mxu0
        %v1010 = vadd.f32 0.0, %v1009
        %v1011 = vpop.f32.mrb[0].mxu0
        %v1012 = vpop.f32.mrb[0].mxu0
        %v1013 = vpop.f32.mrb[0].mxu0
        %1014 = vdwg.mxu0
        %v1015 = vmul.f32 %v1010, 0.35355338
        %v1016 = vsel %vm488, %v1015, -inf
        %1017 = vmax.xlane.f32.xlu0 %v1016
        %v1018 = vpop.xlane.xlu0 %1017
        %v1019 = vsub.f32 %v1015, %v1018
        %v1020 = vmul.f32 %v1019, 1.442695
        %v1021 = vpow.pop %v1020
        %v1022 = vsel %vm488, %v1021, 0.0
        %1023 = vadd.xlane.f32.xlu0 %v1022
        %v1024 = vpop.xlane.xlu0 %1023
        %v1025 = vrcp.pop %v1024
        %v1026 = vmul.f32 %v1021, %v1025
        %v1027 = vpack.c.bf16 %v1026, %v1026
        %1028 = vrot.lane.b32.xlu0 %v487, 104
        %v1029 = vpop.permute.xlu0 %1028
        %v1031 = vsel %vm488, %v1027, 0
        %v1034 = vsel %vm551, %v1029, 0
        %1036 = vmatprep.subr.bf16.mxu0 0
        %1037 = vmatpush1.bf16.msra.mxu0 %v1034
        %1038 = vmatprep.subr.bf16.mxu0 0
        %1039 = vmatpush1.bf16.msra.mxu0 0
        %1040 = vmatprep.subr.bf16.mxu0 0
        %1041 = vmatpush1.bf16.msra.mxu0 0
        %1042 = vmatprep.subr.bf16.mxu0 0
        %1043 = vmatpush1.bf16.msra.mxu0 0
        %1044 = vmatprep.subr.bf16.mxu0 0
        %1045 = vmatpush1.bf16.msra.mxu0 0
        %1046 = vmatprep.subr.bf16.mxu0 0
        %1047 = vmatpush1.bf16.msra.mxu0 0
        %1048 = vmatprep.subr.bf16.mxu0 0
        %1049 = vmatpush1.bf16.msra.mxu0 0
        %1050 = vmatprep.subr.bf16.mxu0 0
        %1051 = vmatpush1.bf16.msra.mxu0 0
        %1052 = vmatprep.subr.bf16.mxu0 0
        %1053 = vmatpush1.bf16.msra.mxu0 0
        %1054 = vmatprep.subr.bf16.mxu0 0
        %1055 = vmatpush1.bf16.msra.mxu0 0
        %1056 = vmatprep.subr.bf16.mxu0 0
        %1057 = vmatpush1.bf16.msra.mxu0 0
        %1058 = vmatprep.subr.bf16.mxu0 0
        %1059 = vmatpush1.bf16.msra.mxu0 0
        %1060 = vmatprep.subr.bf16.mxu0 0
        %1061 = vmatpush1.bf16.msra.mxu0 0
        %1062 = vmatprep.subr.bf16.mxu0 0
        %1063 = vmatpush1.bf16.msra.mxu0 0
        %1064 = vmatprep.subr.bf16.mxu0 0
        %1065 = vmatpush1.bf16.msra.mxu0 0
        %1066 = vmatprep.subr.bf16.mxu0 0
        %1067 = vmatpush1.bf16.msra.mxu0 0
        %1068 = vmatprep.mubr.bf16.mxu0 0
        %1069 = vmatmul.mubr.bf16.gmra.mrb[0].mxu0 %v1031
        %v1070 = vpop.f32.mrb[0].mxu0
        %v1071 = vadd.f32 0.0, %v1070
        %v1072 = vpop.f32.mrb[0].mxu0
        %v1073 = vpop.f32.mrb[0].mxu0
        %v1074 = vpop.f32.mrb[0].mxu0
        %1075 = vdwg.mxu0
        %v1076 = vpack.c.bf16 %v1071, %v1071
        %v1077 = vld [vmem:[%s3 + $0xc] sm:$0xf]
        %v1079 = vsel %vm488, %v1076, 0
        %v1082 = vsel %vm551, %v1077, 0
        %1084 = vmatprep.subr.bf16.mxu0 0
        %1085 = vmatpush1.bf16.msra.mxu0 %v1082
        %1086 = vmatprep.subr.bf16.mxu0 0
        %1087 = vmatpush1.bf16.msra.mxu0 0
        %1088 = vmatprep.subr.bf16.mxu0 0
        %1089 = vmatpush1.bf16.msra.mxu0 0
        %1090 = vmatprep.subr.bf16.mxu0 0
        %1091 = vmatpush1.bf16.msra.mxu0 0
        %1092 = vmatprep.subr.bf16.mxu0 0
        %1093 = vmatpush1.bf16.msra.mxu0 0
        %1094 = vmatprep.subr.bf16.mxu0 0
        %1095 = vmatpush1.bf16.msra.mxu0 0
        %1096 = vmatprep.subr.bf16.mxu0 0
        %1097 = vmatpush1.bf16.msra.mxu0 0
        %1098 = vmatprep.subr.bf16.mxu0 0
        %1099 = vmatpush1.bf16.msra.mxu0 0
        %1100 = vmatprep.subr.bf16.mxu0 0
        %1101 = vmatpush1.bf16.msra.mxu0 0
        %1102 = vmatprep.subr.bf16.mxu0 0
        %1103 = vmatpush1.bf16.msra.mxu0 0
        %1104 = vmatprep.subr.bf16.mxu0 0
        %1105 = vmatpush1.bf16.msra.mxu0 0
        %1106 = vmatprep.subr.bf16.mxu0 0
        %1107 = vmatpush1.bf16.msra.mxu0 0
        %1108 = vmatprep.subr.bf16.mxu0 0
        %1109 = vmatpush1.bf16.msra.mxu0 0
        %1110 = vmatprep.subr.bf16.mxu0 0
        %1111 = vmatpush1.bf16.msra.mxu0 0
        %1112 = vmatprep.subr.bf16.mxu0 0
        %1113 = vmatpush1.bf16.msra.mxu0 0
        %1114 = vmatprep.subr.bf16.mxu0 0
        %1115 = vmatpush1.bf16.msra.mxu0 0
        %1116 = vmatprep.mubr.bf16.mxu0 0
        %1117 = vmatmul.mubr.bf16.gmra.mrb[0].mxu0 %v1079
        %v1118 = vpop.f32.mrb[0].mxu0
        %v1119 = vadd.f32 0.0, %v1118
        %v1120 = vpop.f32.mrb[0].mxu0
        %v1121 = vpop.f32.mrb[0].mxu0
        %v1122 = vpop.f32.mrb[0].mxu0
        %1123 = vdwg.mxu0
        %v1124 = vadd.f32 %v964, %v1119
        %v1125 = vlaneseq
        %v1126 = vshrl.u32 %v1125, 7
        %v1127 = vsub.s32 0, %v1126
        %v1128 = vrot.slane %v484, %v1127
        %v1129 = vadd.f32 %v1124, %v1128
        %v1130 = vadd.f32 %v317, %v1129
        %v1131 = vsel %vm342, %v1130, 0.0
        %1132 = vadd.xlane.f32.xlu0 %v1131
        %v1133 = vpop.xlane.xlu0 %1132
        %v1134 = vrcp.pop 32.0
        %v1135 = vmul.f32 %v1133, %v1134
        %v1136 = vsub.f32 %v1130, %v1135
        %v1137 = vmul.f32 %v1136, %v1136
        %v1138 = vsel %vm342, %v1137, 0.0
        %1139 = vadd.xlane.f32.xlu0 %v1138
        %v1140 = vpop.xlane.xlu0 %1139
        %v1141 = vmul.f32 %v1140, %v1134
        %v1142 = vadd.f32 %v1141, 1e-05
        %v1143 = vrsqrt.pop %v1142
        %v1144 = vmul.f32 %v1136, %v1143
        %v1145 = vlaneseq
        %v1146 = vshrl.u32 %v1145, 7
        %v1147 = vsub.s32 1, %v1146
        %v1148 = vrot.slane %v484, %v1147
        %v1149 = vmul.f32 %v1144, %v1148
        %v1150 = vlaneseq
        %v1151 = vshrl.u32 %v1150, 7
        %v1152 = vsub.s32 2, %v1151
        %v1153 = vrot.slane %v484, %v1152
        %v1154 = vadd.f32 %v1149, %v1153
        %v1155 = vpack.c.bf16 %v1154, %v1154
        %v1156 = vld [vmem:[#allocation2] sm:$0xf]
        %v1157 = vld [vmem:[#allocation2 + $0x4] sm:$0xf]
        %v1158 = vld [vmem:[#allocation2 + $0x8] sm:$0xf]
        %v1159 = vld [vmem:[#allocation2 + $0xc] sm:$0xf]
        %v1160 = vld [vmem:[%s5] sm:$0x1]
        %v1162 = vlaneseq
        %v1163 = vshrl.u32 %v1162, 7
        %v1164 = vsub.s32 0, %v1163
        %v1165 = vrot.slane %v1160, %v1164
        %v1171 = vunpack.c.l.b16 %v1156
        %v1172 = vunpack.c.l.b16 %v1157
        %v1173 = vunpack.c.l.b16 %v1158
        %v1174 = vunpack.c.l.b16 %v1159
        %v1175 = vpack.c.b16 %v1172, %v1171
        %v1176 = vpack.c.b16 %v1174, %v1173
        %v1180 = vsel %vm342, %v1155, 0
        %1182 = vmatprep.subr.bf16.mxu0 0
        %1183 = vmatpush1.bf16.msra.mxu0 %v1175
        %1184 = vmatprep.subr.bf16.mxu0 0
        %1185 = vmatpush1.bf16.msra.mxu0 %v1176
        %1186 = vmatprep.subr.bf16.mxu0 0
        %1187 = vmatpush1.bf16.msra.mxu0 0
        %1188 = vmatprep.subr.bf16.mxu0 0
        %1189 = vmatpush1.bf16.msra.mxu0 0
        %1190 = vmatprep.subr.bf16.mxu0 0
        %1191 = vmatpush1.bf16.msra.mxu0 0
        %1192 = vmatprep.subr.bf16.mxu0 0
        %1193 = vmatpush1.bf16.msra.mxu0 0
        %1194 = vmatprep.subr.bf16.mxu0 0
        %1195 = vmatpush1.bf16.msra.mxu0 0
        %1196 = vmatprep.subr.bf16.mxu0 0
        %1197 = vmatpush1.bf16.msra.mxu0 0
        %1198 = vmatprep.subr.bf16.mxu0 0
        %1199 = vmatpush1.bf16.msra.mxu0 0
        %1200 = vmatprep.subr.bf16.mxu0 0
        %1201 = vmatpush1.bf16.msra.mxu0 0
        %1202 = vmatprep.subr.bf16.mxu0 0
        %1203 = vmatpush1.bf16.msra.mxu0 0
        %1204 = vmatprep.subr.bf16.mxu0 0
        %1205 = vmatpush1.bf16.msra.mxu0 0
        %1206 = vmatprep.subr.bf16.mxu0 0
        %1207 = vmatpush1.bf16.msra.mxu0 0
        %1208 = vmatprep.subr.bf16.mxu0 0
        %1209 = vmatpush1.bf16.msra.mxu0 0
        %1210 = vmatprep.subr.bf16.mxu0 0
        %1211 = vmatpush1.bf16.msra.mxu0 0
        %1212 = vmatprep.subr.bf16.mxu0 0
        %1213 = vmatpush1.bf16.msra.mxu0 0
        %1214 = vmatprep.mubr.bf16.mxu0 0
        %1215 = vmatmul.mubr.bf16.gmra.mrb[0].mxu0 %v1180
        %v1216 = vpop.f32.mrb[0].mxu0
        %v1217 = vadd.f32 %v1165, %v1216
        %v1218 = vpop.f32.mrb[0].mxu0
        %v1219 = vpop.f32.mrb[0].mxu0
        %v1220 = vpop.f32.mrb[0].mxu0
        %1221 = vdwg.mxu0
        %v1222 = vmax.f32 %v1217, 0.0
        %v1223 = vpack.c.bf16 %v1222, %v1222
        %v1224 = vld [vmem:[%s6] sm:$0xf]
        %v1225 = vld [vmem:[%s6 + $0x4] sm:$0xf]
        %v1226 = vld [vmem:[%s6 + $0x8] sm:$0xf]
        %v1227 = vld [vmem:[%s6 + $0xc] sm:$0xf]
        %v1228 = vld [vmem:[%s6 + $0x10] sm:$0xf]
        %v1229 = vld [vmem:[%s6 + $0x14] sm:$0xf]
        %v1230 = vld [vmem:[%s6 + $0x18] sm:$0xf]
        %v1231 = vld [vmem:[%s6 + $0x1c] sm:$0xf]
        %v1232 = vlaneseq
        %v1233 = vshrl.u32 %v1232, 7
        %v1234 = vsub.s32 3, %v1233
        %v1235 = vrot.slane %v484, %v1234
        %v1244 = vunpack.c.l.b16 %v1224
        %v1245 = vunpack.c.l.b16 %v1225
        %v1246 = vunpack.c.l.b16 %v1226
        %v1247 = vunpack.c.l.b16 %v1227
        %v1248 = vunpack.c.l.b16 %v1228
        %v1249 = vunpack.c.l.b16 %v1229
        %v1250 = vunpack.c.l.b16 %v1230
        %v1251 = vunpack.c.l.b16 %v1231
        %v1252 = vpack.c.b16 %v1245, %v1244
        %v1253 = vpack.c.b16 %v1247, %v1246
        %v1254 = vpack.c.b16 %v1249, %v1248
        %v1255 = vpack.c.b16 %v1251, %v1250
        %vm1260 = vcmask 523264
        %v1262 = vsel %vm1260, %v1223, 0
        %1264 = vmatprep.subr.bf16.mxu0 0
        %1265 = vmatpush1.bf16.msra.mxu0 %v1252
        %1266 = vmatprep.subr.bf16.mxu0 0
        %1267 = vmatpush1.bf16.msra.mxu0 %v1253
        %1268 = vmatprep.subr.bf16.mxu0 0
        %1269 = vmatpush1.bf16.msra.mxu0 %v1254
        %1270 = vmatprep.subr.bf16.mxu0 0
        %1271 = vmatpush1.bf16.msra.mxu0 %v1255
        %1272 = vmatprep.subr.bf16.mxu0 0
        %1273 = vmatpush1.bf16.msra.mxu0 0
        %1274 = vmatprep.subr.bf16.mxu0 0
        %1275 = vmatpush1.bf16.msra.mxu0 0
        %1276 = vmatprep.subr.bf16.mxu0 0
        %1277 = vmatpush1.bf16.msra.mxu0 0
        %1278 = vmatprep.subr.bf16.mxu0 0
        %1279 = vmatpush1.bf16.msra.mxu0 0
        %1280 = vmatprep.subr.bf16.mxu0 0
        %1281 = vmatpush1.bf16.msra.mxu0 0
        %1282 = vmatprep.subr.bf16.mxu0 0
        %1283 = vmatpush1.bf16.msra.mxu0 0
        %1284 = vmatprep.subr.bf16.mxu0 0
        %1285 = vmatpush1.bf16.msra.mxu0 0
        %1286 = vmatprep.subr.bf16.mxu0 0
        %1287 = vmatpush1.bf16.msra.mxu0 0
        %1288 = vmatprep.subr.bf16.mxu0 0
        %1289 = vmatpush1.bf16.msra.mxu0 0
        %1290 = vmatprep.subr.bf16.mxu0 0
        %1291 = vmatpush1.bf16.msra.mxu0 0
        %1292 = vmatprep.subr.bf16.mxu0 0
        %1293 = vmatpush1.bf16.msra.mxu0 0
        %1294 = vmatprep.subr.bf16.mxu0 0
        %1295 = vmatpush1.bf16.msra.mxu0 0
        %1296 = vmatprep.mubr.bf16.mxu0 0
        %1297 = vmatmul.mubr.bf16.gmra.mrb[0].mxu0 %v1262
        %v1298 = vpop.f32.mrb[0].mxu0
        %v1299 = vadd.f32 %v1235, %v1298
        %v1300 = vpop.f32.mrb[0].mxu0
        %v1301 = vpop.f32.mrb[0].mxu0
        %v1302 = vpop.f32.mrb[0].mxu0
        %1303 = vdwg.mxu0
        %v1304 = vadd.f32 %v1154, %v1299
        %v1305 = vsel %vm342, %v1304, 0.0
        %1306 = vadd.xlane.f32.xlu0 %v1305
        %v1307 = vpop.xlane.xlu0 %1306
        %v1308 = vmul.f32 %v1307, %v1134
        %v1309 = vsub.f32 %v1304, %v1308
        %v1310 = vmul.f32 %v1309, %v1309
        %v1311 = vsel %vm342, %v1310, 0.0
        %1312 = vadd.xlane.f32.xlu0 %v1311
        %v1313 = vpop.xlane.xlu0 %1312
        %v1314 = vmul.f32 %v1313, %v1134
        %v1315 = vadd.f32 %v1314, 1e-05
        %v1316 = vrsqrt.pop %v1315
        %v1317 = vmul.f32 %v1309, %v1316
        %v1318 = vlaneseq
        %v1319 = vshrl.u32 %v1318, 7
        %v1320 = vsub.s32 4, %v1319
        %v1321 = vrot.slane %v484, %v1320
        %v1322 = vmul.f32 %v1317, %v1321
        %v1323 = vlaneseq
        %v1324 = vshrl.u32 %v1323, 7
        %v1325 = vsub.s32 5, %v1324
        %v1326 = vrot.slane %v484, %v1325
        %v1327 = vadd.f32 %v1322, %v1326
        %1328 = vst.msk [vmem:[%s311] sm:$0xff] %vm342, %v1327
        %s1329 = sand.u32 %s204, 1
        %s1330 = scalar_lea.sflag [#allocation4], %s1329
        %s1331 = sand.u32 %s204, 1
        %s1332 = smul.addr %s1331, 8
        %s1333 = scalar_lea.vmem [#allocation5], %s1332
        // Predicated region
        $region57: #{tpu_custom_call.1} parent=51 // pred_check
          %p1334 = pneg %p214
        $region58: #{tpu_custom_call.1} parent=51 // pred_check_branch
          %1336 = sbr.rel (%p1334) target = $region60
        $region59: #{tpu_custom_call.1} parent=51 // pred_region
          %s1338 = ssub.s32 128, 128
          %1339 = vsyncadd %s1330, %s1338
          %s1340 = smul.addr %s23, 128
          %s1341 = scalar_lea.hbm %s8, %s1340
          %s1343 = sshll.u32 %s1333, 4
          %s1344 = int_to_ptr.vmem [resolvable:$true] %s1343
          %1346 = dma.vmem_to_hbm [thread:$0]  %s1344, 128, %s1341, %s1330
        $region60: #{tpu_custom_call.1} parent=51 // pred_fallthru
          _
      $region52: #{tpu_custom_call.1} parent=5 // pred_fallthru
        _
      %p1347 = scmp.le.s32.totalorder 2, %s18
      // Predicated region
      $region61: #{tpu_custom_call.1} parent=5 // pred_check
        %p1348 = pneg %p1347
      $region62: #{tpu_custom_call.1} parent=5 // pred_check_branch
        %1350 = sbr.rel (%p1348) target = $region64
      $region63: #{tpu_custom_call.1} parent=5 // pred_region
        %s1351 = ssub.s32 %s18, 2
        // Predicated region
        $region65: #{tpu_custom_call.1} parent=63 // pred_check
          %p1352 = pneg %p220
        $region66: #{tpu_custom_call.1} parent=63 // pred_check_branch
          %1354 = sbr.rel (%p1352) target = $region68
        $region67: #{tpu_custom_call.1} parent=63 // pred_region
          %s1355 = sand.u32 %s205, 1
          %s1356 = scalar_lea.sflag [#allocation4], %s1355
          %s1357 = sand.u32 %s205, 1
          %s1358 = smul.addr %s1357, 8
          %s1359 = scalar_lea.vmem [#allocation5], %s1358
          %1360 = dma.done %s1356, 128
        $region68: #{tpu_custom_call.1} parent=63 // pred_fallthru
          _
      $region64: #{tpu_custom_call.1} parent=5 // pred_fallthru
        _
    $region6: #{tpu_custom_call.1} parent=1 // loop_footer
      %s22 = sadd.s32 1, %s18
    $region7: #{tpu_custom_call.1} parent=1 // loop_footer_branch
      %17 = sbr.rel target = $region3
    $region8: #{tpu_custom_call.1} parent=1 // loop_exit
      _
    %1361 = vsyncpa [#allocation3], 1
    %s1362 = scalar_lea.sflag [#allocation3], 1
    %1363 = vsyncpa %s1362, 1
    %1364 = vsyncpa [#allocation4], 1
    %s1365 = scalar_lea.sflag [#allocation4], 1
    %1366 = vsyncpa %s1365, 1

</llo_original>
